<compile_context>
chip_gen: v6e
topology: v6e:2x2x1
jax: 0.10.0
libtpu: 0.0.40
codegen_flags: <defaults>
</compile_context>

<pallas_src>
import jax
import jax.numpy as jnp
from jax.experimental import pallas as pl
from jax.experimental.pallas import tpu as pltpu


# ---------------------------------------------------------------------------
# Pallas kernel factory: fused bidirectional LSTM layer (+ optional fc head)
#   gate order matches PyTorch: i, f, g, o within each direction's 4H block.
# ---------------------------------------------------------------------------
def _make_bilstm_kernel(T, Bp, H, with_head):
    def recurrence(x_ref, wih_ref, b_ref, whhf_ref, whhb_ref,
                   xp_scr, yf_scr, yb_scr):
        # 1) Sequence-wide input projection for BOTH directions in one MXU
        #    matmul, with the (broadcast) bias folded in -- computed once,
        #    outside the sequential recurrence.
        xp_scr[...] = (
            jnp.dot(x_ref[...].astype(jnp.bfloat16), wih_ref[...],
                    preferred_element_type=jnp.float32)
            + b_ref[...])                                   # [T*Bp, 8H] f32

        hf = jnp.zeros((Bp, H), jnp.float32)
        cf = jnp.zeros((Bp, H), jnp.float32)
        hb = jnp.zeros((Bp, H), jnp.float32)
        cb = jnp.zeros((Bp, H), jnp.float32)

        def cell(gates, c_prev):
            i = jax.nn.sigmoid(gates[:, 0:H])
            f = jax.nn.sigmoid(gates[:, H:2 * H])
            g = jnp.tanh(gates[:, 2 * H:3 * H])
            o = jax.nn.sigmoid(gates[:, 3 * H:4 * H])
            c = f * c_prev + i * g
            h = o * jnp.tanh(c)
            return h, c

        # 2) Recurrence: only h_prev @ W_hh is left per timestep.  T is small
        #    and static, so the loop is fully unrolled straight-line code with
        #    static (sublane-aligned) slice offsets.
        # TODO(synk): for long sequences switch to a T-chunk grid axis
        #   ("arbitrary") with h/c carried in scratch + lax.fori_loop, and set
        #   vmem_limit_bytes explicitly (v7x only has 64 MiB VMEM).
        # TODO(synk): on v7x the two directions could be sharded across the
        #   two TensorCores with a parallel direction grid axis.
        for t in range(T):
            rf = t * Bp                 # forward-direction time index
            rb = (T - 1 - t) * Bp       # backward-direction time index
            gf = xp_scr[rf:rf + Bp, 0:4 * H] + jnp.dot(
                hf.astype(jnp.bfloat16), whhf_ref[...],
                preferred_element_type=jnp.float32)
            hf, cf = cell(gf, cf)
            yf_scr[rf:rf + Bp, :] = hf

            gb = xp_scr[rb:rb + Bp, 4 * H:8 * H] + jnp.dot(
                hb.astype(jnp.bfloat16), whhb_ref[...],
                preferred_element_type=jnp.float32)
            hb, cb = cell(gb, cb)
            yb_scr[rb:rb + Bp, :] = hb

    if with_head:
        def kernel(x_ref, wih_ref, b_ref, whhf_ref, whhb_ref,
                   fc1w_ref, fc1b_ref, fc2w_ref, fc2b_ref, mask_ref,
                   out_ref, xp_scr, yf_scr, yb_scr):
            recurrence(x_ref, wih_ref, b_ref, whhf_ref, whhb_ref,
                       xp_scr, yf_scr, yb_scr)
            # Fused fc1 -> fc2 -> mask head: the [T*Bp, 2H] activations never
            # leave VMEM.  (Final dropout is identity in eval mode.)
            y = jnp.concatenate([yf_scr[...], yb_scr[...]], axis=-1)
            h1 = jnp.dot(y.astype(jnp.bfloat16), fc1w_ref[...],
                         preferred_element_type=jnp.float32) + fc1b_ref[...]
            o = jnp.dot(h1.astype(jnp.bfloat16), fc2w_ref[...],
                        preferred_element_type=jnp.float32) + fc2b_ref[...]
            out_ref[...] = o * mask_ref[...]
    else:
        def kernel(x_ref, wih_ref, b_ref, whhf_ref, whhb_ref,
                   out_ref, xp_scr, yf_scr, yb_scr):
            recurrence(x_ref, wih_ref, b_ref, whhf_ref, whhb_ref,
                       xp_scr, yf_scr, yb_scr)
            # Single pass of full-block stores at the end (lane-halves of the
            # [T*Bp, 2H] output).
            out_ref[:, 0:H] = yf_scr[...]
            out_ref[:, H:2 * H] = yb_scr[...]

    return kernel


def _full_spec(shape):
    # Whole-array block (grid=(1,)), so every (8,128) constraint is satisfied
    # by the "equals full array dims" rule.
    return pl.BlockSpec(shape, lambda i: (0, 0))


def bilstm_layer(x_flat, wih, b, whh_f, whh_b, *, T, Bp, H):
    """One fused bidirectional LSTM layer on [T*Bp, D] -> [T*Bp, 2H]."""
    TB, D = x_flat.shape
    kernel = _make_bilstm_kernel(T, Bp, H, with_head=False)
    return pl.pallas_call(
        kernel,
        out_shape=jax.ShapeDtypeStruct((TB, 2 * H), jnp.float32),
        grid=(1,),
        in_specs=[
            _full_spec((TB, D)),
            _full_spec((D, 8 * H)),
            _full_spec((1, 8 * H)),
            _full_spec((H, 4 * H)),
            _full_spec((H, 4 * H)),
        ],
        out_specs=_full_spec((TB, 2 * H)),
        scratch_shapes=[
            pltpu.VMEM((TB, 8 * H), jnp.float32),   # precomputed input proj
            pltpu.VMEM((TB, H), jnp.float32),       # forward outputs
            pltpu.VMEM((TB, H), jnp.float32),       # backward outputs
        ],
        compiler_params=pltpu.CompilerParams(
            dimension_semantics=("arbitrary",)),
    )(x_flat, wih, b, whh_f, whh_b)


def bilstm_layer_with_head(x_flat, wih, b, whh_f, whh_b,
                           fc1_w, fc1_b, fc2_w, fc2_b, mask_flat,
                           *, T, Bp, H, O):
    """Last bidirectional LSTM layer with fc1->fc2->mask fused in."""
    TB, D = x_flat.shape
    kernel = _make_bilstm_kernel(T, Bp, H, with_head=True)
    return pl.pallas_call(
        kernel,
        out_shape=jax.ShapeDtypeStruct((TB, O), jnp.float32),
        grid=(1,),
        in_specs=[
            _full_spec((TB, D)),
            _full_spec((D, 8 * H)),
            _full_spec((1, 8 * H)),
            _full_spec((H, 4 * H)),
            _full_spec((H, 4 * H)),
            _full_spec((2 * H, 32)),
            _full_spec((1, 32)),
            _full_spec((32, O)),
            _full_spec((1, O)),
            _full_spec((TB, 1)),
        ],
        out_specs=_full_spec((TB, O)),
        scratch_shapes=[
            pltpu.VMEM((TB, 8 * H), jnp.float32),
            pltpu.VMEM((TB, H), jnp.float32),
            pltpu.VMEM((TB, H), jnp.float32),
        ],
        compiler_params=pltpu.CompilerParams(
            dimension_semantics=("arbitrary",)),
    )(x_flat, wih, b, whh_f, whh_b, fc1_w, fc1_b, fc2_w, fc2_b, mask_flat)


# ---------------------------------------------------------------------------
# Parameter construction (deterministic, synthetic)
#   wih_l{l}:   [D_in, 8H] bf16  (cols 0:4H = fwd, 4H:8H = bwd; gate order ifgo)
#   b_l{l}:     [1, 8H]    f32   (bias_ih + bias_hh, both directions)
#   whh_{f,b}:  [H, 4H]    bf16
# ---------------------------------------------------------------------------
def init_params(key, vocab_size, embedding_dim, hidden_dim, output_dim, n_layers):
    H = hidden_dim
    params = {}

    def uni(k, shape, scale):
        return jax.random.uniform(k, shape, jnp.float32, -scale, scale)

    n_keys = 1 + 6 * n_layers + 4
    keys = iter(jax.random.split(key, n_keys))

    params["embedding"] = jax.random.normal(
        next(keys), (vocab_size, embedding_dim), jnp.float32)

    s = 1.0 / (hidden_dim ** 0.5)
    for layer in range(n_layers):
        d_in = embedding_dim if layer == 0 else 2 * H
        wih_f = uni(next(keys), (d_in, 4 * H), s)
        whh_f = uni(next(keys), (H, 4 * H), s)
        b_f = uni(next(keys), (1, 4 * H), s)
        wih_b = uni(next(keys), (d_in, 4 * H), s)
        whh_b = uni(next(keys), (H, 4 * H), s)
        b_b = uni(next(keys), (1, 4 * H), s)
        params[f"wih_l{layer}"] = jnp.concatenate(
            [wih_f, wih_b], axis=1).astype(jnp.bfloat16)
        params[f"b_l{layer}"] = jnp.concatenate([b_f, b_b], axis=1)
        params[f"whh_f_l{layer}"] = whh_f.astype(jnp.bfloat16)
        params[f"whh_b_l{layer}"] = whh_b.astype(jnp.bfloat16)

    s1 = 1.0 / ((2 * hidden_dim) ** 0.5)
    params["fc1_w"] = uni(next(keys), (2 * hidden_dim, 32), s1).astype(jnp.bfloat16)
    params["fc1_b"] = uni(next(keys), (1, 32), s1)
    s2 = 1.0 / (32.0 ** 0.5)
    params["fc2_w"] = uni(next(keys), (32, output_dim), s2).astype(jnp.bfloat16)
    params["fc2_b"] = uni(next(keys), (1, output_dim), s2)
    return params


# ---------------------------------------------------------------------------
# Forward pass (matches AddressParser.forward, eval mode)
# ---------------------------------------------------------------------------
def address_parser_forward(params, text, mask, n_layers, hidden_dim, output_dim):
    # Embedding lookup (row gather) stays as plain-JAX glue.
    emb = jnp.take(params["embedding"], text, axis=0)        # [B, T, E]
    B, T, E = emb.shape
    H = hidden_dim
    Bp = ((B + 7) // 8) * 8                                   # pad to full sublanes

    # One-time transpose to time-major + batch pad; everything below stays in
    # the flattened time-major layout [T*Bp, features].
    x = jnp.transpose(emb, (1, 0, 2))                         # [T, B, E]
    x = jnp.pad(x, ((0, 0), (0, Bp - B), (0, 0)))             # [T, Bp, E]
    x = x.reshape(T * Bp, E)

    if mask is None:
        mask_flat = jnp.ones((T * Bp, 1), jnp.float32)
    else:
        m = jnp.transpose(mask.astype(jnp.float32))           # [T, B]
        m = jnp.pad(m, ((0, 0), (0, Bp - B)))                 # [T, Bp]
        mask_flat = m.reshape(T * Bp, 1)

    out_flat = None
    for layer in range(n_layers):
        wih = params[f"wih_l{layer}"]
        b = params[f"b_l{layer}"]
        whh_f = params[f"whh_f_l{layer}"]
        whh_b = params[f"whh_b_l{layer}"]
        if layer < n_layers - 1:
            # inter-layer dropout: identity in eval mode
            x = bilstm_layer(x, wih, b, whh_f, whh_b, T=T, Bp=Bp, H=H)
        else:
            # final dropout: identity; fc1 -> fc2 -> mask fused into the kernel
            out_flat = bilstm_layer_with_head(
                x, wih, b, whh_f, whh_b,
                params["fc1_w"], params["fc1_b"],
                params["fc2_w"], params["fc2_b"],
                mask_flat, T=T, Bp=Bp, H=H, O=output_dim)

    out = out_flat.reshape(T, Bp, output_dim)[:, :B, :]       # drop batch pad
    return jnp.transpose(out, (1, 0, 2))                      # [B, T, O]


if __name__ == "__main__":
    vocab_size = 50
    embedding_dim = 16
    hidden_dim = 32
    output_dim = 8
    n_layers = 2
    B, T = 2, 8

    key = jax.random.PRNGKey(0)
    pkey, tkey, mkey = jax.random.split(key, 3)

    params = init_params(pkey, vocab_size, embedding_dim, hidden_dim,
                         output_dim, n_layers)
    text = jax.random.randint(tkey, (B, T), 0, vocab_size, dtype=jnp.int32)
    mask = (jax.random.uniform(mkey, (B, T)) > 0.2).astype(jnp.float32)

    out = address_parser_forward(params, text, mask,
                                 n_layers, hidden_dim, output_dim)
    out = jax.block_until_ready(out)
    assert out.shape == (B, T, output_dim)
    assert bool(jnp.all(jnp.isfinite(out)))
    print("KERNEL_OK")
</pallas_src>

<mosaic_0001>
module attributes {stable_mosaic.version = 11 : i64} {
  func.func @kernel(%arg0: i32, %arg1: memref<64x16xf32, #tpu.memory_space<vmem>>, %arg2: memref<16x256xbf16, #tpu.memory_space<vmem>>, %arg3: memref<1x256xf32, #tpu.memory_space<vmem>>, %arg4: memref<32x128xbf16, #tpu.memory_space<vmem>>, %arg5: memref<32x128xbf16, #tpu.memory_space<vmem>>, %arg6: memref<64x64xf32, #tpu.memory_space<vmem>>, %arg7: memref<64x256xf32, #tpu.memory_space<vmem>>, %arg8: memref<64x32xf32, #tpu.memory_space<vmem>>, %arg9: memref<64x32xf32, #tpu.memory_space<vmem>>) attributes {dimension_semantics = [#tpu.dimension_semantics<arbitrary>], iteration_bounds = array<i64: 1>, scalar_prefetch = 0 : i64, scratch_operands = 3 : i64, tpu.core_type = #tpu.core_type<tc>, window_params = [{pipeline_mode = #tpu.pipeline_mode<synchronous>, transform_indices = @transform_0, window_bounds = array<i64: 64, 16>}, {pipeline_mode = #tpu.pipeline_mode<synchronous>, transform_indices = @transform_1, window_bounds = array<i64: 16, 256>}, {pipeline_mode = #tpu.pipeline_mode<synchronous>, transform_indices = @transform_2, window_bounds = array<i64: 1, 256>}, {pipeline_mode = #tpu.pipeline_mode<synchronous>, transform_indices = @transform_3, window_bounds = array<i64: 32, 128>}, {pipeline_mode = #tpu.pipeline_mode<synchronous>, transform_indices = @transform_4, window_bounds = array<i64: 32, 128>}, {pipeline_mode = #tpu.pipeline_mode<synchronous>, transform_indices = @transform_5, window_bounds = array<i64: 64, 64>}]} {
    %c0 = arith.constant 0 : index
    %c0_0 = arith.constant 0 : index
    %0 = vector.load %arg1[%c0, %c0_0] : memref<64x16xf32, #tpu.memory_space<vmem>>, vector<64x16xf32>
    %1 = arith.truncf %0 : vector<64x16xf32> to vector<64x16xbf16>
    %c0_1 = arith.constant 0 : index
    %c0_2 = arith.constant 0 : index
    %2 = vector.load %arg2[%c0_1, %c0_2] : memref<16x256xbf16, #tpu.memory_space<vmem>>, vector<16x256xbf16>
    %cst = arith.constant dense<0.000000e+00> : vector<64x256xf32>
    %3 = tpu.matmul %1, %2, %cst {dimension_numbers = #tpu.dot_dimension_numbers<[1], [0], [0], [1], [0, 0, 1, 1], [], []>} : vector<64x16xbf16>, vector<16x256xbf16>, vector<64x256xf32> -> vector<64x256xf32>
    %c0_3 = arith.constant 0 : index
    %c0_4 = arith.constant 0 : index
    %4 = vector.load %arg3[%c0_3, %c0_4] : memref<1x256xf32, #tpu.memory_space<vmem>>, vector<1x256xf32>
    %5 = vector.broadcast %4 : vector<1x256xf32> to vector<64x256xf32>
    %6 = arith.addf %3, %5 : vector<64x256xf32>
    %c0_5 = arith.constant 0 : index
    %c0_6 = arith.constant 0 : index
    %7 = vector.load %arg7[%c0_5, %c0_6] : memref<64x256xf32, #tpu.memory_space<vmem>>, vector<64x256xf32>
    tpu.vector_store %arg7[%c0_5, %c0_6], %6 {strides = array<i32>} : memref<64x256xf32, #tpu.memory_space<vmem>>, vector<64x256xf32>,
    %cst_7 = arith.constant 0.000000e+00 : f32
    %8 = vector.broadcast %cst_7 : f32 to vector<8x32xf32>
    %cst_8 = arith.constant 0.000000e+00 : f32
    %9 = vector.broadcast %cst_8 : f32 to vector<8x32xf32>
    %cst_9 = arith.constant 0.000000e+00 : f32
    %10 = vector.broadcast %cst_9 : f32 to vector<8x32xf32>
    %cst_10 = arith.constant 0.000000e+00 : f32
    %11 = vector.broadcast %cst_10 : f32 to vector<8x32xf32>
    %c0_11 = arith.constant 0 : index
    %c0_12 = arith.constant 0 : index
    %12 = vector.load %arg7[%c0_11, %c0_12] : memref<64x256xf32, #tpu.memory_space<vmem>>, vector<8x128xf32>
    %13 = arith.truncf %8 : vector<8x32xf32> to vector<8x32xbf16>
    %c0_13 = arith.constant 0 : index
    %c0_14 = arith.constant 0 : index
    %14 = vector.load %arg4[%c0_13, %c0_14] : memref<32x128xbf16, #tpu.memory_space<vmem>>, vector<32x128xbf16>
    %cst_15 = arith.constant dense<0.000000e+00> : vector<8x128xf32>
    %15 = tpu.matmul %13, %14, %cst_15 {dimension_numbers = #tpu.dot_dimension_numbers<[1], [0], [0], [1], [0, 0, 1, 1], [], []>} : vector<8x32xbf16>, vector<32x128xbf16>, vector<8x128xf32> -> vector<8x128xf32>
    %16 = arith.addf %12, %15 : vector<8x128xf32>
    %17 = vector.extract_strided_slice %16 {offsets = [0, 0], sizes = [8, 32], strides = [1, 1]} : vector<8x128xf32> to vector<8x32xf32>
    %18 = arith.negf %17 : vector<8x32xf32>
    %19 = math.exp %18 : vector<8x32xf32>
    %cst_16 = arith.constant 1.000000e+00 : f32
    %20 = vector.broadcast %cst_16 : f32 to vector<8x32xf32>
    %21 = arith.addf %20, %19 : vector<8x32xf32>
    %22 = arith.divf %20, %21 : vector<8x32xf32>
    %23 = vector.extract_strided_slice %16 {offsets = [0, 32], sizes = [8, 32], strides = [1, 1]} : vector<8x128xf32> to vector<8x32xf32>
    %24 = arith.negf %23 : vector<8x32xf32>
    %25 = math.exp %24 : vector<8x32xf32>
    %cst_17 = arith.constant 1.000000e+00 : f32
    %26 = vector.broadcast %cst_17 : f32 to vector<8x32xf32>
    %27 = arith.addf %26, %25 : vector<8x32xf32>
    %28 = arith.divf %26, %27 : vector<8x32xf32>
    %29 = vector.extract_strided_slice %16 {offsets = [0, 64], sizes = [8, 32], strides = [1, 1]} : vector<8x128xf32> to vector<8x32xf32>
    %30 = math.tanh %29 : vector<8x32xf32>
    %31 = vector.extract_strided_slice %16 {offsets = [0, 96], sizes = [8, 32], strides = [1, 1]} : vector<8x128xf32> to vector<8x32xf32>
    %32 = arith.negf %31 : vector<8x32xf32>
    %33 = math.exp %32 : vector<8x32xf32>
    %cst_18 = arith.constant 1.000000e+00 : f32
    %34 = vector.broadcast %cst_18 : f32 to vector<8x32xf32>
    %35 = arith.addf %34, %33 : vector<8x32xf32>
    %36 = arith.divf %34, %35 : vector<8x32xf32>
    %37 = arith.mulf %28, %9 : vector<8x32xf32>
    %38 = arith.mulf %22, %30 : vector<8x32xf32>
    %39 = arith.addf %37, %38 : vector<8x32xf32>
    %40 = math.tanh %39 : vector<8x32xf32>
    %41 = arith.mulf %36, %40 : vector<8x32xf32>
    %c0_19 = arith.constant 0 : index
    %c0_20 = arith.constant 0 : index
    %42 = vector.load %arg8[%c0_19, %c0_20] : memref<64x32xf32, #tpu.memory_space<vmem>>, vector<8x32xf32>
    tpu.vector_store %arg8[%c0_19, %c0_20], %41 {strides = array<i32>} : memref<64x32xf32, #tpu.memory_space<vmem>>, vector<8x32xf32>,
    %c56 = arith.constant 56 : index
    %c128 = arith.constant 128 : index
    %43 = vector.load %arg7[%c56, %c128] : memref<64x256xf32, #tpu.memory_space<vmem>>, vector<8x128xf32>
    %44 = arith.truncf %10 : vector<8x32xf32> to vector<8x32xbf16>
    %c0_21 = arith.constant 0 : index
    %c0_22 = arith.constant 0 : index
    %45 = vector.load %arg5[%c0_21, %c0_22] : memref<32x128xbf16, #tpu.memory_space<vmem>>, vector<32x128xbf16>
    %cst_23 = arith.constant dense<0.000000e+00> : vector<8x128xf32>
    %46 = tpu.matmul %44, %45, %cst_23 {dimension_numbers = #tpu.dot_dimension_numbers<[1], [0], [0], [1], [0, 0, 1, 1], [], []>} : vector<8x32xbf16>, vector<32x128xbf16>, vector<8x128xf32> -> vector<8x128xf32>
    %47 = arith.addf %43, %46 : vector<8x128xf32>
    %48 = vector.extract_strided_slice %47 {offsets = [0, 0], sizes = [8, 32], strides = [1, 1]} : vector<8x128xf32> to vector<8x32xf32>
    %49 = arith.negf %48 : vector<8x32xf32>
    %50 = math.exp %49 : vector<8x32xf32>
    %cst_24 = arith.constant 1.000000e+00 : f32
    %51 = vector.broadcast %cst_24 : f32 to vector<8x32xf32>
    %52 = arith.addf %51, %50 : vector<8x32xf32>
    %53 = arith.divf %51, %52 : vector<8x32xf32>
    %54 = vector.extract_strided_slice %47 {offsets = [0, 32], sizes = [8, 32], strides = [1, 1]} : vector<8x128xf32> to vector<8x32xf32>
    %55 = arith.negf %54 : vector<8x32xf32>
    %56 = math.exp %55 : vector<8x32xf32>
    %cst_25 = arith.constant 1.000000e+00 : f32
    %57 = vector.broadcast %cst_25 : f32 to vector<8x32xf32>
    %58 = arith.addf %57, %56 : vector<8x32xf32>
    %59 = arith.divf %57, %58 : vector<8x32xf32>
    %60 = vector.extract_strided_slice %47 {offsets = [0, 64], sizes = [8, 32], strides = [1, 1]} : vector<8x128xf32> to vector<8x32xf32>
    %61 = math.tanh %60 : vector<8x32xf32>
    %62 = vector.extract_strided_slice %47 {offsets = [0, 96], sizes = [8, 32], strides = [1, 1]} : vector<8x128xf32> to vector<8x32xf32>
    %63 = arith.negf %62 : vector<8x32xf32>
    %64 = math.exp %63 : vector<8x32xf32>
    %cst_26 = arith.constant 1.000000e+00 : f32
    %65 = vector.broadcast %cst_26 : f32 to vector<8x32xf32>
    %66 = arith.addf %65, %64 : vector<8x32xf32>
    %67 = arith.divf %65, %66 : vector<8x32xf32>
    %68 = arith.mulf %59, %11 : vector<8x32xf32>
    %69 = arith.mulf %53, %61 : vector<8x32xf32>
    %70 = arith.addf %68, %69 : vector<8x32xf32>
    %71 = math.tanh %70 : vector<8x32xf32>
    %72 = arith.mulf %67, %71 : vector<8x32xf32>
    %c56_27 = arith.constant 56 : index
    %c0_28 = arith.constant 0 : index
    %73 = vector.load %arg9[%c56_27, %c0_28] : memref<64x32xf32, #tpu.memory_space<vmem>>, vector<8x32xf32>
    tpu.vector_store %arg9[%c56_27, %c0_28], %72 {strides = array<i32>} : memref<64x32xf32, #tpu.memory_space<vmem>>, vector<8x32xf32>,
    %c8 = arith.constant 8 : index
    %c0_29 = arith.constant 0 : index
    %74 = vector.load %arg7[%c8, %c0_29] : memref<64x256xf32, #tpu.memory_space<vmem>>, vector<8x128xf32>
    %75 = arith.truncf %41 : vector<8x32xf32> to vector<8x32xbf16>
    %c0_30 = arith.constant 0 : index
    %c0_31 = arith.constant 0 : index
    %76 = vector.load %arg4[%c0_30, %c0_31] : memref<32x128xbf16, #tpu.memory_space<vmem>>, vector<32x128xbf16>
    %cst_32 = arith.constant dense<0.000000e+00> : vector<8x128xf32>
    %77 = tpu.matmul %75, %76, %cst_32 {dimension_numbers = #tpu.dot_dimension_numbers<[1], [0], [0], [1], [0, 0, 1, 1], [], []>} : vector<8x32xbf16>, vector<32x128xbf16>, vector<8x128xf32> -> vector<8x128xf32>
    %78 = arith.addf %74, %77 : vector<8x128xf32>
    %79 = vector.extract_strided_slice %78 {offsets = [0, 0], sizes = [8, 32], strides = [1, 1]} : vector<8x128xf32> to vector<8x32xf32>
    %80 = arith.negf %79 : vector<8x32xf32>
    %81 = math.exp %80 : vector<8x32xf32>
    %cst_33 = arith.constant 1.000000e+00 : f32
    %82 = vector.broadcast %cst_33 : f32 to vector<8x32xf32>
    %83 = arith.addf %82, %81 : vector<8x32xf32>
    %84 = arith.divf %82, %83 : vector<8x32xf32>
    %85 = vector.extract_strided_slice %78 {offsets = [0, 32], sizes = [8, 32], strides = [1, 1]} : vector<8x128xf32> to vector<8x32xf32>
    %86 = arith.negf %85 : vector<8x32xf32>
    %87 = math.exp %86 : vector<8x32xf32>
    %cst_34 = arith.constant 1.000000e+00 : f32
    %88 = vector.broadcast %cst_34 : f32 to vector<8x32xf32>
    %89 = arith.addf %88, %87 : vector<8x32xf32>
    %90 = arith.divf %88, %89 : vector<8x32xf32>
    %91 = vector.extract_strided_slice %78 {offsets = [0, 64], sizes = [8, 32], strides = [1, 1]} : vector<8x128xf32> to vector<8x32xf32>
    %92 = math.tanh %91 : vector<8x32xf32>
    %93 = vector.extract_strided_slice %78 {offsets = [0, 96], sizes = [8, 32], strides = [1, 1]} : vector<8x128xf32> to vector<8x32xf32>
    %94 = arith.negf %93 : vector<8x32xf32>
    %95 = math.exp %94 : vector<8x32xf32>
    %cst_35 = arith.constant 1.000000e+00 : f32
    %96 = vector.broadcast %cst_35 : f32 to vector<8x32xf32>
    %97 = arith.addf %96, %95 : vector<8x32xf32>
    %98 = arith.divf %96, %97 : vector<8x32xf32>
    %99 = arith.mulf %90, %39 : vector<8x32xf32>
    %100 = arith.mulf %84, %92 : vector<8x32xf32>
    %101 = arith.addf %99, %100 : vector<8x32xf32>
    %102 = math.tanh %101 : vector<8x32xf32>
    %103 = arith.mulf %98, %102 : vector<8x32xf32>
    %c8_36 = arith.constant 8 : index
    %c0_37 = arith.constant 0 : index
    %104 = vector.load %arg8[%c8_36, %c0_37] : memref<64x32xf32, #tpu.memory_space<vmem>>, vector<8x32xf32>
    tpu.vector_store %arg8[%c8_36, %c0_37], %103 {strides = array<i32>} : memref<64x32xf32, #tpu.memory_space<vmem>>, vector<8x32xf32>,
    %c48 = arith.constant 48 : index
    %c128_38 = arith.constant 128 : index
    %105 = vector.load %arg7[%c48, %c128_38] : memref<64x256xf32, #tpu.memory_space<vmem>>, vector<8x128xf32>
    %106 = arith.truncf %72 : vector<8x32xf32> to vector<8x32xbf16>
    %c0_39 = arith.constant 0 : index
    %c0_40 = arith.constant 0 : index
    %107 = vector.load %arg5[%c0_39, %c0_40] : memref<32x128xbf16, #tpu.memory_space<vmem>>, vector<32x128xbf16>
    %cst_41 = arith.constant dense<0.000000e+00> : vector<8x128xf32>
    %108 = tpu.matmul %106, %107, %cst_41 {dimension_numbers = #tpu.dot_dimension_numbers<[1], [0], [0], [1], [0, 0, 1, 1], [], []>} : vector<8x32xbf16>, vector<32x128xbf16>, vector<8x128xf32> -> vector<8x128xf32>
    %109 = arith.addf %105, %108 : vector<8x128xf32>
    %110 = vector.extract_strided_slice %109 {offsets = [0, 0], sizes = [8, 32], strides = [1, 1]} : vector<8x128xf32> to vector<8x32xf32>
    %111 = arith.negf %110 : vector<8x32xf32>
    %112 = math.exp %111 : vector<8x32xf32>
    %cst_42 = arith.constant 1.000000e+00 : f32
    %113 = vector.broadcast %cst_42 : f32 to vector<8x32xf32>
    %114 = arith.addf %113, %112 : vector<8x32xf32>
    %115 = arith.divf %113, %114 : vector<8x32xf32>
    %116 = vector.extract_strided_slice %109 {offsets = [0, 32], sizes = [8, 32], strides = [1, 1]} : vector<8x128xf32> to vector<8x32xf32>
    %117 = arith.negf %116 : vector<8x32xf32>
    %118 = math.exp %117 : vector<8x32xf32>
    %cst_43 = arith.constant 1.000000e+00 : f32
    %119 = vector.broadcast %cst_43 : f32 to vector<8x32xf32>
    %120 = arith.addf %119, %118 : vector<8x32xf32>
    %121 = arith.divf %119, %120 : vector<8x32xf32>
    %122 = vector.extract_strided_slice %109 {offsets = [0, 64], sizes = [8, 32], strides = [1, 1]} : vector<8x128xf32> to vector<8x32xf32>
    %123 = math.tanh %122 : vector<8x32xf32>
    %124 = vector.extract_strided_slice %109 {offsets = [0, 96], sizes = [8, 32], strides = [1, 1]} : vector<8x128xf32> to vector<8x32xf32>
    %125 = arith.negf %124 : vector<8x32xf32>
    %126 = math.exp %125 : vector<8x32xf32>
    %cst_44 = arith.constant 1.000000e+00 : f32
    %127 = vector.broadcast %cst_44 : f32 to vector<8x32xf32>
    %128 = arith.addf %127, %126 : vector<8x32xf32>
    %129 = arith.divf %127, %128 : vector<8x32xf32>
    %130 = arith.mulf %121, %70 : vector<8x32xf32>
    %131 = arith.mulf %115, %123 : vector<8x32xf32>
    %132 = arith.addf %130, %131 : vector<8x32xf32>
    %133 = math.tanh %132 : vector<8x32xf32>
    %134 = arith.mulf %129, %133 : vector<8x32xf32>
    %c48_45 = arith.constant 48 : index
    %c0_46 = arith.constant 0 : index
    %135 = vector.load %arg9[%c48_45, %c0_46] : memref<64x32xf32, #tpu.memory_space<vmem>>, vector<8x32xf32>
    tpu.vector_store %arg9[%c48_45, %c0_46], %134 {strides = array<i32>} : memref<64x32xf32, #tpu.memory_space<vmem>>, vector<8x32xf32>,
    %c16 = arith.constant 16 : index
    %c0_47 = arith.constant 0 : index
    %136 = vector.load %arg7[%c16, %c0_47] : memref<64x256xf32, #tpu.memory_space<vmem>>, vector<8x128xf32>
    %137 = arith.truncf %103 : vector<8x32xf32> to vector<8x32xbf16>
    %c0_48 = arith.constant 0 : index
    %c0_49 = arith.constant 0 : index
    %138 = vector.load %arg4[%c0_48, %c0_49] : memref<32x128xbf16, #tpu.memory_space<vmem>>, vector<32x128xbf16>
    %cst_50 = arith.constant dense<0.000000e+00> : vector<8x128xf32>
    %139 = tpu.matmul %137, %138, %cst_50 {dimension_numbers = #tpu.dot_dimension_numbers<[1], [0], [0], [1], [0, 0, 1, 1], [], []>} : vector<8x32xbf16>, vector<32x128xbf16>, vector<8x128xf32> -> vector<8x128xf32>
    %140 = arith.addf %136, %139 : vector<8x128xf32>
    %141 = vector.extract_strided_slice %140 {offsets = [0, 0], sizes = [8, 32], strides = [1, 1]} : vector<8x128xf32> to vector<8x32xf32>
    %142 = arith.negf %141 : vector<8x32xf32>
    %143 = math.exp %142 : vector<8x32xf32>
    %cst_51 = arith.constant 1.000000e+00 : f32
    %144 = vector.broadcast %cst_51 : f32 to vector<8x32xf32>
    %145 = arith.addf %144, %143 : vector<8x32xf32>
    %146 = arith.divf %144, %145 : vector<8x32xf32>
    %147 = vector.extract_strided_slice %140 {offsets = [0, 32], sizes = [8, 32], strides = [1, 1]} : vector<8x128xf32> to vector<8x32xf32>
    %148 = arith.negf %147 : vector<8x32xf32>
    %149 = math.exp %148 : vector<8x32xf32>
    %cst_52 = arith.constant 1.000000e+00 : f32
    %150 = vector.broadcast %cst_52 : f32 to vector<8x32xf32>
    %151 = arith.addf %150, %149 : vector<8x32xf32>
    %152 = arith.divf %150, %151 : vector<8x32xf32>
    %153 = vector.extract_strided_slice %140 {offsets = [0, 64], sizes = [8, 32], strides = [1, 1]} : vector<8x128xf32> to vector<8x32xf32>
    %154 = math.tanh %153 : vector<8x32xf32>
    %155 = vector.extract_strided_slice %140 {offsets = [0, 96], sizes = [8, 32], strides = [1, 1]} : vector<8x128xf32> to vector<8x32xf32>
    %156 = arith.negf %155 : vector<8x32xf32>
    %157 = math.exp %156 : vector<8x32xf32>
    %cst_53 = arith.constant 1.000000e+00 : f32
    %158 = vector.broadcast %cst_53 : f32 to vector<8x32xf32>
    %159 = arith.addf %158, %157 : vector<8x32xf32>
    %160 = arith.divf %158, %159 : vector<8x32xf32>
    %161 = arith.mulf %152, %101 : vector<8x32xf32>
    %162 = arith.mulf %146, %154 : vector<8x32xf32>
    %163 = arith.addf %161, %162 : vector<8x32xf32>
    %164 = math.tanh %163 : vector<8x32xf32>
    %165 = arith.mulf %160, %164 : vector<8x32xf32>
    %c16_54 = arith.constant 16 : index
    %c0_55 = arith.constant 0 : index
    %166 = vector.load %arg8[%c16_54, %c0_55] : memref<64x32xf32, #tpu.memory_space<vmem>>, vector<8x32xf32>
    tpu.vector_store %arg8[%c16_54, %c0_55], %165 {strides = array<i32>} : memref<64x32xf32, #tpu.memory_space<vmem>>, vector<8x32xf32>,
    %c40 = arith.constant 40 : index
    %c128_56 = arith.constant 128 : index
    %167 = vector.load %arg7[%c40, %c128_56] : memref<64x256xf32, #tpu.memory_space<vmem>>, vector<8x128xf32>
    %168 = arith.truncf %134 : vector<8x32xf32> to vector<8x32xbf16>
    %c0_57 = arith.constant 0 : index
    %c0_58 = arith.constant 0 : index
    %169 = vector.load %arg5[%c0_57, %c0_58] : memref<32x128xbf16, #tpu.memory_space<vmem>>, vector<32x128xbf16>
    %cst_59 = arith.constant dense<0.000000e+00> : vector<8x128xf32>
    %170 = tpu.matmul %168, %169, %cst_59 {dimension_numbers = #tpu.dot_dimension_numbers<[1], [0], [0], [1], [0, 0, 1, 1], [], []>} : vector<8x32xbf16>, vector<32x128xbf16>, vector<8x128xf32> -> vector<8x128xf32>
    %171 = arith.addf %167, %170 : vector<8x128xf32>
    %172 = vector.extract_strided_slice %171 {offsets = [0, 0], sizes = [8, 32], strides = [1, 1]} : vector<8x128xf32> to vector<8x32xf32>
    %173 = arith.negf %172 : vector<8x32xf32>
    %174 = math.exp %173 : vector<8x32xf32>
    %cst_60 = arith.constant 1.000000e+00 : f32
    %175 = vector.broadcast %cst_60 : f32 to vector<8x32xf32>
    %176 = arith.addf %175, %174 : vector<8x32xf32>
    %177 = arith.divf %175, %176 : vector<8x32xf32>
    %178 = vector.extract_strided_slice %171 {offsets = [0, 32], sizes = [8, 32], strides = [1, 1]} : vector<8x128xf32> to vector<8x32xf32>
    %179 = arith.negf %178 : vector<8x32xf32>
    %180 = math.exp %179 : vector<8x32xf32>
    %cst_61 = arith.constant 1.000000e+00 : f32
    %181 = vector.broadcast %cst_61 : f32 to vector<8x32xf32>
    %182 = arith.addf %181, %180 : vector<8x32xf32>
    %183 = arith.divf %181, %182 : vector<8x32xf32>
    %184 = vector.extract_strided_slice %171 {offsets = [0, 64], sizes = [8, 32], strides = [1, 1]} : vector<8x128xf32> to vector<8x32xf32>
    %185 = math.tanh %184 : vector<8x32xf32>
    %186 = vector.extract_strided_slice %171 {offsets = [0, 96], sizes = [8, 32], strides = [1, 1]} : vector<8x128xf32> to vector<8x32xf32>
    %187 = arith.negf %186 : vector<8x32xf32>
    %188 = math.exp %187 : vector<8x32xf32>
    %cst_62 = arith.constant 1.000000e+00 : f32
    %189 = vector.broadcast %cst_62 : f32 to vector<8x32xf32>
    %190 = arith.addf %189, %188 : vector<8x32xf32>
    %191 = arith.divf %189, %190 : vector<8x32xf32>
    %192 = arith.mulf %183, %132 : vector<8x32xf32>
    %193 = arith.mulf %177, %185 : vector<8x32xf32>
    %194 = arith.addf %192, %193 : vector<8x32xf32>
    %195 = math.tanh %194 : vector<8x32xf32>
    %196 = arith.mulf %191, %195 : vector<8x32xf32>
    %c40_63 = arith.constant 40 : index
    %c0_64 = arith.constant 0 : index
    %197 = vector.load %arg9[%c40_63, %c0_64] : memref<64x32xf32, #tpu.memory_space<vmem>>, vector<8x32xf32>
    tpu.vector_store %arg9[%c40_63, %c0_64], %196 {strides = array<i32>} : memref<64x32xf32, #tpu.memory_space<vmem>>, vector<8x32xf32>,
    %c24 = arith.constant 24 : index
    %c0_65 = arith.constant 0 : index
    %198 = vector.load %arg7[%c24, %c0_65] : memref<64x256xf32, #tpu.memory_space<vmem>>, vector<8x128xf32>
    %199 = arith.truncf %165 : vector<8x32xf32> to vector<8x32xbf16>
    %c0_66 = arith.constant 0 : index
    %c0_67 = arith.constant 0 : index
    %200 = vector.load %arg4[%c0_66, %c0_67] : memref<32x128xbf16, #tpu.memory_space<vmem>>, vector<32x128xbf16>
    %cst_68 = arith.constant dense<0.000000e+00> : vector<8x128xf32>
    %201 = tpu.matmul %199, %200, %cst_68 {dimension_numbers = #tpu.dot_dimension_numbers<[1], [0], [0], [1], [0, 0, 1, 1], [], []>} : vector<8x32xbf16>, vector<32x128xbf16>, vector<8x128xf32> -> vector<8x128xf32>
    %202 = arith.addf %198, %201 : vector<8x128xf32>
    %203 = vector.extract_strided_slice %202 {offsets = [0, 0], sizes = [8, 32], strides = [1, 1]} : vector<8x128xf32> to vector<8x32xf32>
    %204 = arith.negf %203 : vector<8x32xf32>
    %205 = math.exp %204 : vector<8x32xf32>
    %cst_69 = arith.constant 1.000000e+00 : f32
    %206 = vector.broadcast %cst_69 : f32 to vector<8x32xf32>
    %207 = arith.addf %206, %205 : vector<8x32xf32>
    %208 = arith.divf %206, %207 : vector<8x32xf32>
    %209 = vector.extract_strided_slice %202 {offsets = [0, 32], sizes = [8, 32], strides = [1, 1]} : vector<8x128xf32> to vector<8x32xf32>
    %210 = arith.negf %209 : vector<8x32xf32>
    %211 = math.exp %210 : vector<8x32xf32>
    %cst_70 = arith.constant 1.000000e+00 : f32
    %212 = vector.broadcast %cst_70 : f32 to vector<8x32xf32>
    %213 = arith.addf %212, %211 : vector<8x32xf32>
    %214 = arith.divf %212, %213 : vector<8x32xf32>
    %215 = vector.extract_strided_slice %202 {offsets = [0, 64], sizes = [8, 32], strides = [1, 1]} : vector<8x128xf32> to vector<8x32xf32>
    %216 = math.tanh %215 : vector<8x32xf32>
    %217 = vector.extract_strided_slice %202 {offsets = [0, 96], sizes = [8, 32], strides = [1, 1]} : vector<8x128xf32> to vector<8x32xf32>
    %218 = arith.negf %217 : vector<8x32xf32>
    %219 = math.exp %218 : vector<8x32xf32>
    %cst_71 = arith.constant 1.000000e+00 : f32
    %220 = vector.broadcast %cst_71 : f32 to vector<8x32xf32>
    %221 = arith.addf %220, %219 : vector<8x32xf32>
    %222 = arith.divf %220, %221 : vector<8x32xf32>
    %223 = arith.mulf %214, %163 : vector<8x32xf32>
    %224 = arith.mulf %208, %216 : vector<8x32xf32>
    %225 = arith.addf %223, %224 : vector<8x32xf32>
    %226 = math.tanh %225 : vector<8x32xf32>
    %227 = arith.mulf %222, %226 : vector<8x32xf32>
    %c24_72 = arith.constant 24 : index
    %c0_73 = arith.constant 0 : index
    %228 = vector.load %arg8[%c24_72, %c0_73] : memref<64x32xf32, #tpu.memory_space<vmem>>, vector<8x32xf32>
    tpu.vector_store %arg8[%c24_72, %c0_73], %227 {strides = array<i32>} : memref<64x32xf32, #tpu.memory_space<vmem>>, vector<8x32xf32>,
    %c32 = arith.constant 32 : index
    %c128_74 = arith.constant 128 : index
    %229 = vector.load %arg7[%c32, %c128_74] : memref<64x256xf32, #tpu.memory_space<vmem>>, vector<8x128xf32>
    %230 = arith.truncf %196 : vector<8x32xf32> to vector<8x32xbf16>
    %c0_75 = arith.constant 0 : index
    %c0_76 = arith.constant 0 : index
    %231 = vector.load %arg5[%c0_75, %c0_76] : memref<32x128xbf16, #tpu.memory_space<vmem>>, vector<32x128xbf16>
    %cst_77 = arith.constant dense<0.000000e+00> : vector<8x128xf32>
    %232 = tpu.matmul %230, %231, %cst_77 {dimension_numbers = #tpu.dot_dimension_numbers<[1], [0], [0], [1], [0, 0, 1, 1], [], []>} : vector<8x32xbf16>, vector<32x128xbf16>, vector<8x128xf32> -> vector<8x128xf32>
    %233 = arith.addf %229, %232 : vector<8x128xf32>
    %234 = vector.extract_strided_slice %233 {offsets = [0, 0], sizes = [8, 32], strides = [1, 1]} : vector<8x128xf32> to vector<8x32xf32>
    %235 = arith.negf %234 : vector<8x32xf32>
    %236 = math.exp %235 : vector<8x32xf32>
    %cst_78 = arith.constant 1.000000e+00 : f32
    %237 = vector.broadcast %cst_78 : f32 to vector<8x32xf32>
    %238 = arith.addf %237, %236 : vector<8x32xf32>
    %239 = arith.divf %237, %238 : vector<8x32xf32>
    %240 = vector.extract_strided_slice %233 {offsets = [0, 32], sizes = [8, 32], strides = [1, 1]} : vector<8x128xf32> to vector<8x32xf32>
    %241 = arith.negf %240 : vector<8x32xf32>
    %242 = math.exp %241 : vector<8x32xf32>
    %cst_79 = arith.constant 1.000000e+00 : f32
    %243 = vector.broadcast %cst_79 : f32 to vector<8x32xf32>
    %244 = arith.addf %243, %242 : vector<8x32xf32>
    %245 = arith.divf %243, %244 : vector<8x32xf32>
    %246 = vector.extract_strided_slice %233 {offsets = [0, 64], sizes = [8, 32], strides = [1, 1]} : vector<8x128xf32> to vector<8x32xf32>
    %247 = math.tanh %246 : vector<8x32xf32>
    %248 = vector.extract_strided_slice %233 {offsets = [0, 96], sizes = [8, 32], strides = [1, 1]} : vector<8x128xf32> to vector<8x32xf32>
    %249 = arith.negf %248 : vector<8x32xf32>
    %250 = math.exp %249 : vector<8x32xf32>
    %cst_80 = arith.constant 1.000000e+00 : f32
    %251 = vector.broadcast %cst_80 : f32 to vector<8x32xf32>
    %252 = arith.addf %251, %250 : vector<8x32xf32>
    %253 = arith.divf %251, %252 : vector<8x32xf32>
    %254 = arith.mulf %245, %194 : vector<8x32xf32>
    %255 = arith.mulf %239, %247 : vector<8x32xf32>
    %256 = arith.addf %254, %255 : vector<8x32xf32>
    %257 = math.tanh %256 : vector<8x32xf32>
    %258 = arith.mulf %253, %257 : vector<8x32xf32>
    %c32_81 = arith.constant 32 : index
    %c0_82 = arith.constant 0 : index
    %259 = vector.load %arg9[%c32_81, %c0_82] : memref<64x32xf32, #tpu.memory_space<vmem>>, vector<8x32xf32>
    tpu.vector_store %arg9[%c32_81, %c0_82], %258 {strides = array<i32>} : memref<64x32xf32, #tpu.memory_space<vmem>>, vector<8x32xf32>,
    %c32_83 = arith.constant 32 : index
    %c0_84 = arith.constant 0 : index
    %260 = vector.load %arg7[%c32_83, %c0_84] : memref<64x256xf32, #tpu.memory_space<vmem>>, vector<8x128xf32>
    %261 = arith.truncf %227 : vector<8x32xf32> to vector<8x32xbf16>
    %c0_85 = arith.constant 0 : index
    %c0_86 = arith.constant 0 : index
    %262 = vector.load %arg4[%c0_85, %c0_86] : memref<32x128xbf16, #tpu.memory_space<vmem>>, vector<32x128xbf16>
    %cst_87 = arith.constant dense<0.000000e+00> : vector<8x128xf32>
    %263 = tpu.matmul %261, %262, %cst_87 {dimension_numbers = #tpu.dot_dimension_numbers<[1], [0], [0], [1], [0, 0, 1, 1], [], []>} : vector<8x32xbf16>, vector<32x128xbf16>, vector<8x128xf32> -> vector<8x128xf32>
    %264 = arith.addf %260, %263 : vector<8x128xf32>
    %265 = vector.extract_strided_slice %264 {offsets = [0, 0], sizes = [8, 32], strides = [1, 1]} : vector<8x128xf32> to vector<8x32xf32>
    %266 = arith.negf %265 : vector<8x32xf32>
    %267 = math.exp %266 : vector<8x32xf32>
    %cst_88 = arith.constant 1.000000e+00 : f32
    %268 = vector.broadcast %cst_88 : f32 to vector<8x32xf32>
    %269 = arith.addf %268, %267 : vector<8x32xf32>
    %270 = arith.divf %268, %269 : vector<8x32xf32>
    %271 = vector.extract_strided_slice %264 {offsets = [0, 32], sizes = [8, 32], strides = [1, 1]} : vector<8x128xf32> to vector<8x32xf32>
    %272 = arith.negf %271 : vector<8x32xf32>
    %273 = math.exp %272 : vector<8x32xf32>
    %cst_89 = arith.constant 1.000000e+00 : f32
    %274 = vector.broadcast %cst_89 : f32 to vector<8x32xf32>
    %275 = arith.addf %274, %273 : vector<8x32xf32>
    %276 = arith.divf %274, %275 : vector<8x32xf32>
    %277 = vector.extract_strided_slice %264 {offsets = [0, 64], sizes = [8, 32], strides = [1, 1]} : vector<8x128xf32> to vector<8x32xf32>
    %278 = math.tanh %277 : vector<8x32xf32>
    %279 = vector.extract_strided_slice %264 {offsets = [0, 96], sizes = [8, 32], strides = [1, 1]} : vector<8x128xf32> to vector<8x32xf32>
    %280 = arith.negf %279 : vector<8x32xf32>
    %281 = math.exp %280 : vector<8x32xf32>
    %cst_90 = arith.constant 1.000000e+00 : f32
    %282 = vector.broadcast %cst_90 : f32 to vector<8x32xf32>
    %283 = arith.addf %282, %281 : vector<8x32xf32>
    %284 = arith.divf %282, %283 : vector<8x32xf32>
    %285 = arith.mulf %276, %225 : vector<8x32xf32>
    %286 = arith.mulf %270, %278 : vector<8x32xf32>
    %287 = arith.addf %285, %286 : vector<8x32xf32>
    %288 = math.tanh %287 : vector<8x32xf32>
    %289 = arith.mulf %284, %288 : vector<8x32xf32>
    %c32_91 = arith.constant 32 : index
    %c0_92 = arith.constant 0 : index
    %290 = vector.load %arg8[%c32_91, %c0_92] : memref<64x32xf32, #tpu.memory_space<vmem>>, vector<8x32xf32>
    tpu.vector_store %arg8[%c32_91, %c0_92], %289 {strides = array<i32>} : memref<64x32xf32, #tpu.memory_space<vmem>>, vector<8x32xf32>,
    %c24_93 = arith.constant 24 : index
    %c128_94 = arith.constant 128 : index
    %291 = vector.load %arg7[%c24_93, %c128_94] : memref<64x256xf32, #tpu.memory_space<vmem>>, vector<8x128xf32>
    %292 = arith.truncf %258 : vector<8x32xf32> to vector<8x32xbf16>
    %c0_95 = arith.constant 0 : index
    %c0_96 = arith.constant 0 : index
    %293 = vector.load %arg5[%c0_95, %c0_96] : memref<32x128xbf16, #tpu.memory_space<vmem>>, vector<32x128xbf16>
    %cst_97 = arith.constant dense<0.000000e+00> : vector<8x128xf32>
    %294 = tpu.matmul %292, %293, %cst_97 {dimension_numbers = #tpu.dot_dimension_numbers<[1], [0], [0], [1], [0, 0, 1, 1], [], []>} : vector<8x32xbf16>, vector<32x128xbf16>, vector<8x128xf32> -> vector<8x128xf32>
    %295 = arith.addf %291, %294 : vector<8x128xf32>
    %296 = vector.extract_strided_slice %295 {offsets = [0, 0], sizes = [8, 32], strides = [1, 1]} : vector<8x128xf32> to vector<8x32xf32>
    %297 = arith.negf %296 : vector<8x32xf32>
    %298 = math.exp %297 : vector<8x32xf32>
    %cst_98 = arith.constant 1.000000e+00 : f32
    %299 = vector.broadcast %cst_98 : f32 to vector<8x32xf32>
    %300 = arith.addf %299, %298 : vector<8x32xf32>
    %301 = arith.divf %299, %300 : vector<8x32xf32>
    %302 = vector.extract_strided_slice %295 {offsets = [0, 32], sizes = [8, 32], strides = [1, 1]} : vector<8x128xf32> to vector<8x32xf32>
    %303 = arith.negf %302 : vector<8x32xf32>
    %304 = math.exp %303 : vector<8x32xf32>
    %cst_99 = arith.constant 1.000000e+00 : f32
    %305 = vector.broadcast %cst_99 : f32 to vector<8x32xf32>
    %306 = arith.addf %305, %304 : vector<8x32xf32>
    %307 = arith.divf %305, %306 : vector<8x32xf32>
    %308 = vector.extract_strided_slice %295 {offsets = [0, 64], sizes = [8, 32], strides = [1, 1]} : vector<8x128xf32> to vector<8x32xf32>
    %309 = math.tanh %308 : vector<8x32xf32>
    %310 = vector.extract_strided_slice %295 {offsets = [0, 96], sizes = [8, 32], strides = [1, 1]} : vector<8x128xf32> to vector<8x32xf32>
    %311 = arith.negf %310 : vector<8x32xf32>
    %312 = math.exp %311 : vector<8x32xf32>
    %cst_100 = arith.constant 1.000000e+00 : f32
    %313 = vector.broadcast %cst_100 : f32 to vector<8x32xf32>
    %314 = arith.addf %313, %312 : vector<8x32xf32>
    %315 = arith.divf %313, %314 : vector<8x32xf32>
    %316 = arith.mulf %307, %256 : vector<8x32xf32>
    %317 = arith.mulf %301, %309 : vector<8x32xf32>
    %318 = arith.addf %316, %317 : vector<8x32xf32>
    %319 = math.tanh %318 : vector<8x32xf32>
    %320 = arith.mulf %315, %319 : vector<8x32xf32>
    %c24_101 = arith.constant 24 : index
    %c0_102 = arith.constant 0 : index
    %321 = vector.load %arg9[%c24_101, %c0_102] : memref<64x32xf32, #tpu.memory_space<vmem>>, vector<8x32xf32>
    tpu.vector_store %arg9[%c24_101, %c0_102], %320 {strides = array<i32>} : memref<64x32xf32, #tpu.memory_space<vmem>>, vector<8x32xf32>,
    %c40_103 = arith.constant 40 : index
    %c0_104 = arith.constant 0 : index
    %322 = vector.load %arg7[%c40_103, %c0_104] : memref<64x256xf32, #tpu.memory_space<vmem>>, vector<8x128xf32>
    %323 = arith.truncf %289 : vector<8x32xf32> to vector<8x32xbf16>
    %c0_105 = arith.constant 0 : index
    %c0_106 = arith.constant 0 : index
    %324 = vector.load %arg4[%c0_105, %c0_106] : memref<32x128xbf16, #tpu.memory_space<vmem>>, vector<32x128xbf16>
    %cst_107 = arith.constant dense<0.000000e+00> : vector<8x128xf32>
    %325 = tpu.matmul %323, %324, %cst_107 {dimension_numbers = #tpu.dot_dimension_numbers<[1], [0], [0], [1], [0, 0, 1, 1], [], []>} : vector<8x32xbf16>, vector<32x128xbf16>, vector<8x128xf32> -> vector<8x128xf32>
    %326 = arith.addf %322, %325 : vector<8x128xf32>
    %327 = vector.extract_strided_slice %326 {offsets = [0, 0], sizes = [8, 32], strides = [1, 1]} : vector<8x128xf32> to vector<8x32xf32>
    %328 = arith.negf %327 : vector<8x32xf32>
    %329 = math.exp %328 : vector<8x32xf32>
    %cst_108 = arith.constant 1.000000e+00 : f32
    %330 = vector.broadcast %cst_108 : f32 to vector<8x32xf32>
    %331 = arith.addf %330, %329 : vector<8x32xf32>
    %332 = arith.divf %330, %331 : vector<8x32xf32>
    %333 = vector.extract_strided_slice %326 {offsets = [0, 32], sizes = [8, 32], strides = [1, 1]} : vector<8x128xf32> to vector<8x32xf32>
    %334 = arith.negf %333 : vector<8x32xf32>
    %335 = math.exp %334 : vector<8x32xf32>
    %cst_109 = arith.constant 1.000000e+00 : f32
    %336 = vector.broadcast %cst_109 : f32 to vector<8x32xf32>
    %337 = arith.addf %336, %335 : vector<8x32xf32>
    %338 = arith.divf %336, %337 : vector<8x32xf32>
    %339 = vector.extract_strided_slice %326 {offsets = [0, 64], sizes = [8, 32], strides = [1, 1]} : vector<8x128xf32> to vector<8x32xf32>
    %340 = math.tanh %339 : vector<8x32xf32>
    %341 = vector.extract_strided_slice %326 {offsets = [0, 96], sizes = [8, 32], strides = [1, 1]} : vector<8x128xf32> to vector<8x32xf32>
    %342 = arith.negf %341 : vector<8x32xf32>
    %343 = math.exp %342 : vector<8x32xf32>
    %cst_110 = arith.constant 1.000000e+00 : f32
    %344 = vector.broadcast %cst_110 : f32 to vector<8x32xf32>
    %345 = arith.addf %344, %343 : vector<8x32xf32>
    %346 = arith.divf %344, %345 : vector<8x32xf32>
    %347 = arith.mulf %338, %287 : vector<8x32xf32>
    %348 = arith.mulf %332, %340 : vector<8x32xf32>
    %349 = arith.addf %347, %348 : vector<8x32xf32>
    %350 = math.tanh %349 : vector<8x32xf32>
    %351 = arith.mulf %346, %350 : vector<8x32xf32>
    %c40_111 = arith.constant 40 : index
    %c0_112 = arith.constant 0 : index
    %352 = vector.load %arg8[%c40_111, %c0_112] : memref<64x32xf32, #tpu.memory_space<vmem>>, vector<8x32xf32>
    tpu.vector_store %arg8[%c40_111, %c0_112], %351 {strides = array<i32>} : memref<64x32xf32, #tpu.memory_space<vmem>>, vector<8x32xf32>,
    %c16_113 = arith.constant 16 : index
    %c128_114 = arith.constant 128 : index
    %353 = vector.load %arg7[%c16_113, %c128_114] : memref<64x256xf32, #tpu.memory_space<vmem>>, vector<8x128xf32>
    %354 = arith.truncf %320 : vector<8x32xf32> to vector<8x32xbf16>
    %c0_115 = arith.constant 0 : index
    %c0_116 = arith.constant 0 : index
    %355 = vector.load %arg5[%c0_115, %c0_116] : memref<32x128xbf16, #tpu.memory_space<vmem>>, vector<32x128xbf16>
    %cst_117 = arith.constant dense<0.000000e+00> : vector<8x128xf32>
    %356 = tpu.matmul %354, %355, %cst_117 {dimension_numbers = #tpu.dot_dimension_numbers<[1], [0], [0], [1], [0, 0, 1, 1], [], []>} : vector<8x32xbf16>, vector<32x128xbf16>, vector<8x128xf32> -> vector<8x128xf32>
    %357 = arith.addf %353, %356 : vector<8x128xf32>
    %358 = vector.extract_strided_slice %357 {offsets = [0, 0], sizes = [8, 32], strides = [1, 1]} : vector<8x128xf32> to vector<8x32xf32>
    %359 = arith.negf %358 : vector<8x32xf32>
    %360 = math.exp %359 : vector<8x32xf32>
    %cst_118 = arith.constant 1.000000e+00 : f32
    %361 = vector.broadcast %cst_118 : f32 to vector<8x32xf32>
    %362 = arith.addf %361, %360 : vector<8x32xf32>
    %363 = arith.divf %361, %362 : vector<8x32xf32>
    %364 = vector.extract_strided_slice %357 {offsets = [0, 32], sizes = [8, 32], strides = [1, 1]} : vector<8x128xf32> to vector<8x32xf32>
    %365 = arith.negf %364 : vector<8x32xf32>
    %366 = math.exp %365 : vector<8x32xf32>
    %cst_119 = arith.constant 1.000000e+00 : f32
    %367 = vector.broadcast %cst_119 : f32 to vector<8x32xf32>
    %368 = arith.addf %367, %366 : vector<8x32xf32>
    %369 = arith.divf %367, %368 : vector<8x32xf32>
    %370 = vector.extract_strided_slice %357 {offsets = [0, 64], sizes = [8, 32], strides = [1, 1]} : vector<8x128xf32> to vector<8x32xf32>
    %371 = math.tanh %370 : vector<8x32xf32>
    %372 = vector.extract_strided_slice %357 {offsets = [0, 96], sizes = [8, 32], strides = [1, 1]} : vector<8x128xf32> to vector<8x32xf32>
    %373 = arith.negf %372 : vector<8x32xf32>
    %374 = math.exp %373 : vector<8x32xf32>
    %cst_120 = arith.constant 1.000000e+00 : f32
    %375 = vector.broadcast %cst_120 : f32 to vector<8x32xf32>
    %376 = arith.addf %375, %374 : vector<8x32xf32>
    %377 = arith.divf %375, %376 : vector<8x32xf32>
    %378 = arith.mulf %369, %318 : vector<8x32xf32>
    %379 = arith.mulf %363, %371 : vector<8x32xf32>
    %380 = arith.addf %378, %379 : vector<8x32xf32>
    %381 = math.tanh %380 : vector<8x32xf32>
    %382 = arith.mulf %377, %381 : vector<8x32xf32>
    %c16_121 = arith.constant 16 : index
    %c0_122 = arith.constant 0 : index
    %383 = vector.load %arg9[%c16_121, %c0_122] : memref<64x32xf32, #tpu.memory_space<vmem>>, vector<8x32xf32>
    tpu.vector_store %arg9[%c16_121, %c0_122], %382 {strides = array<i32>} : memref<64x32xf32, #tpu.memory_space<vmem>>, vector<8x32xf32>,
    %c48_123 = arith.constant 48 : index
    %c0_124 = arith.constant 0 : index
    %384 = vector.load %arg7[%c48_123, %c0_124] : memref<64x256xf32, #tpu.memory_space<vmem>>, vector<8x128xf32>
    %385 = arith.truncf %351 : vector<8x32xf32> to vector<8x32xbf16>
    %c0_125 = arith.constant 0 : index
    %c0_126 = arith.constant 0 : index
    %386 = vector.load %arg4[%c0_125, %c0_126] : memref<32x128xbf16, #tpu.memory_space<vmem>>, vector<32x128xbf16>
    %cst_127 = arith.constant dense<0.000000e+00> : vector<8x128xf32>
    %387 = tpu.matmul %385, %386, %cst_127 {dimension_numbers = #tpu.dot_dimension_numbers<[1], [0], [0], [1], [0, 0, 1, 1], [], []>} : vector<8x32xbf16>, vector<32x128xbf16>, vector<8x128xf32> -> vector<8x128xf32>
    %388 = arith.addf %384, %387 : vector<8x128xf32>
    %389 = vector.extract_strided_slice %388 {offsets = [0, 0], sizes = [8, 32], strides = [1, 1]} : vector<8x128xf32> to vector<8x32xf32>
    %390 = arith.negf %389 : vector<8x32xf32>
    %391 = math.exp %390 : vector<8x32xf32>
    %cst_128 = arith.constant 1.000000e+00 : f32
    %392 = vector.broadcast %cst_128 : f32 to vector<8x32xf32>
    %393 = arith.addf %392, %391 : vector<8x32xf32>
    %394 = arith.divf %392, %393 : vector<8x32xf32>
    %395 = vector.extract_strided_slice %388 {offsets = [0, 32], sizes = [8, 32], strides = [1, 1]} : vector<8x128xf32> to vector<8x32xf32>
    %396 = arith.negf %395 : vector<8x32xf32>
    %397 = math.exp %396 : vector<8x32xf32>
    %cst_129 = arith.constant 1.000000e+00 : f32
    %398 = vector.broadcast %cst_129 : f32 to vector<8x32xf32>
    %399 = arith.addf %398, %397 : vector<8x32xf32>
    %400 = arith.divf %398, %399 : vector<8x32xf32>
    %401 = vector.extract_strided_slice %388 {offsets = [0, 64], sizes = [8, 32], strides = [1, 1]} : vector<8x128xf32> to vector<8x32xf32>
    %402 = math.tanh %401 : vector<8x32xf32>
    %403 = vector.extract_strided_slice %388 {offsets = [0, 96], sizes = [8, 32], strides = [1, 1]} : vector<8x128xf32> to vector<8x32xf32>
    %404 = arith.negf %403 : vector<8x32xf32>
    %405 = math.exp %404 : vector<8x32xf32>
    %cst_130 = arith.constant 1.000000e+00 : f32
    %406 = vector.broadcast %cst_130 : f32 to vector<8x32xf32>
    %407 = arith.addf %406, %405 : vector<8x32xf32>
    %408 = arith.divf %406, %407 : vector<8x32xf32>
    %409 = arith.mulf %400, %349 : vector<8x32xf32>
    %410 = arith.mulf %394, %402 : vector<8x32xf32>
    %411 = arith.addf %409, %410 : vector<8x32xf32>
    %412 = math.tanh %411 : vector<8x32xf32>
    %413 = arith.mulf %408, %412 : vector<8x32xf32>
    %c48_131 = arith.constant 48 : index
    %c0_132 = arith.constant 0 : index
    %414 = vector.load %arg8[%c48_131, %c0_132] : memref<64x32xf32, #tpu.memory_space<vmem>>, vector<8x32xf32>
    tpu.vector_store %arg8[%c48_131, %c0_132], %413 {strides = array<i32>} : memref<64x32xf32, #tpu.memory_space<vmem>>, vector<8x32xf32>,
    %c8_133 = arith.constant 8 : index
    %c128_134 = arith.constant 128 : index
    %415 = vector.load %arg7[%c8_133, %c128_134] : memref<64x256xf32, #tpu.memory_space<vmem>>, vector<8x128xf32>
    %416 = arith.truncf %382 : vector<8x32xf32> to vector<8x32xbf16>
    %c0_135 = arith.constant 0 : index
    %c0_136 = arith.constant 0 : index
    %417 = vector.load %arg5[%c0_135, %c0_136] : memref<32x128xbf16, #tpu.memory_space<vmem>>, vector<32x128xbf16>
    %cst_137 = arith.constant dense<0.000000e+00> : vector<8x128xf32>
    %418 = tpu.matmul %416, %417, %cst_137 {dimension_numbers = #tpu.dot_dimension_numbers<[1], [0], [0], [1], [0, 0, 1, 1], [], []>} : vector<8x32xbf16>, vector<32x128xbf16>, vector<8x128xf32> -> vector<8x128xf32>
    %419 = arith.addf %415, %418 : vector<8x128xf32>
    %420 = vector.extract_strided_slice %419 {offsets = [0, 0], sizes = [8, 32], strides = [1, 1]} : vector<8x128xf32> to vector<8x32xf32>
    %421 = arith.negf %420 : vector<8x32xf32>
    %422 = math.exp %421 : vector<8x32xf32>
    %cst_138 = arith.constant 1.000000e+00 : f32
    %423 = vector.broadcast %cst_138 : f32 to vector<8x32xf32>
    %424 = arith.addf %423, %422 : vector<8x32xf32>
    %425 = arith.divf %423, %424 : vector<8x32xf32>
    %426 = vector.extract_strided_slice %419 {offsets = [0, 32], sizes = [8, 32], strides = [1, 1]} : vector<8x128xf32> to vector<8x32xf32>
    %427 = arith.negf %426 : vector<8x32xf32>
    %428 = math.exp %427 : vector<8x32xf32>
    %cst_139 = arith.constant 1.000000e+00 : f32
    %429 = vector.broadcast %cst_139 : f32 to vector<8x32xf32>
    %430 = arith.addf %429, %428 : vector<8x32xf32>
    %431 = arith.divf %429, %430 : vector<8x32xf32>
    %432 = vector.extract_strided_slice %419 {offsets = [0, 64], sizes = [8, 32], strides = [1, 1]} : vector<8x128xf32> to vector<8x32xf32>
    %433 = math.tanh %432 : vector<8x32xf32>
    %434 = vector.extract_strided_slice %419 {offsets = [0, 96], sizes = [8, 32], strides = [1, 1]} : vector<8x128xf32> to vector<8x32xf32>
    %435 = arith.negf %434 : vector<8x32xf32>
    %436 = math.exp %435 : vector<8x32xf32>
    %cst_140 = arith.constant 1.000000e+00 : f32
    %437 = vector.broadcast %cst_140 : f32 to vector<8x32xf32>
    %438 = arith.addf %437, %436 : vector<8x32xf32>
    %439 = arith.divf %437, %438 : vector<8x32xf32>
    %440 = arith.mulf %431, %380 : vector<8x32xf32>
    %441 = arith.mulf %425, %433 : vector<8x32xf32>
    %442 = arith.addf %440, %441 : vector<8x32xf32>
    %443 = math.tanh %442 : vector<8x32xf32>
    %444 = arith.mulf %439, %443 : vector<8x32xf32>
    %c8_141 = arith.constant 8 : index
    %c0_142 = arith.constant 0 : index
    %445 = vector.load %arg9[%c8_141, %c0_142] : memref<64x32xf32, #tpu.memory_space<vmem>>, vector<8x32xf32>
    tpu.vector_store %arg9[%c8_141, %c0_142], %444 {strides = array<i32>} : memref<64x32xf32, #tpu.memory_space<vmem>>, vector<8x32xf32>,
    %c56_143 = arith.constant 56 : index
    %c0_144 = arith.constant 0 : index
    %446 = vector.load %arg7[%c56_143, %c0_144] : memref<64x256xf32, #tpu.memory_space<vmem>>, vector<8x128xf32>
    %447 = arith.truncf %413 : vector<8x32xf32> to vector<8x32xbf16>
    %c0_145 = arith.constant 0 : index
    %c0_146 = arith.constant 0 : index
    %448 = vector.load %arg4[%c0_145, %c0_146] : memref<32x128xbf16, #tpu.memory_space<vmem>>, vector<32x128xbf16>
    %cst_147 = arith.constant dense<0.000000e+00> : vector<8x128xf32>
    %449 = tpu.matmul %447, %448, %cst_147 {dimension_numbers = #tpu.dot_dimension_numbers<[1], [0], [0], [1], [0, 0, 1, 1], [], []>} : vector<8x32xbf16>, vector<32x128xbf16>, vector<8x128xf32> -> vector<8x128xf32>
    %450 = arith.addf %446, %449 : vector<8x128xf32>
    %451 = vector.extract_strided_slice %450 {offsets = [0, 0], sizes = [8, 32], strides = [1, 1]} : vector<8x128xf32> to vector<8x32xf32>
    %452 = arith.negf %451 : vector<8x32xf32>
    %453 = math.exp %452 : vector<8x32xf32>
    %cst_148 = arith.constant 1.000000e+00 : f32
    %454 = vector.broadcast %cst_148 : f32 to vector<8x32xf32>
    %455 = arith.addf %454, %453 : vector<8x32xf32>
    %456 = arith.divf %454, %455 : vector<8x32xf32>
    %457 = vector.extract_strided_slice %450 {offsets = [0, 32], sizes = [8, 32], strides = [1, 1]} : vector<8x128xf32> to vector<8x32xf32>
    %458 = arith.negf %457 : vector<8x32xf32>
    %459 = math.exp %458 : vector<8x32xf32>
    %cst_149 = arith.constant 1.000000e+00 : f32
    %460 = vector.broadcast %cst_149 : f32 to vector<8x32xf32>
    %461 = arith.addf %460, %459 : vector<8x32xf32>
    %462 = arith.divf %460, %461 : vector<8x32xf32>
    %463 = vector.extract_strided_slice %450 {offsets = [0, 64], sizes = [8, 32], strides = [1, 1]} : vector<8x128xf32> to vector<8x32xf32>
    %464 = math.tanh %463 : vector<8x32xf32>
    %465 = vector.extract_strided_slice %450 {offsets = [0, 96], sizes = [8, 32], strides = [1, 1]} : vector<8x128xf32> to vector<8x32xf32>
    %466 = arith.negf %465 : vector<8x32xf32>
    %467 = math.exp %466 : vector<8x32xf32>
    %cst_150 = arith.constant 1.000000e+00 : f32
    %468 = vector.broadcast %cst_150 : f32 to vector<8x32xf32>
    %469 = arith.addf %468, %467 : vector<8x32xf32>
    %470 = arith.divf %468, %469 : vector<8x32xf32>
    %471 = arith.mulf %462, %411 : vector<8x32xf32>
    %472 = arith.mulf %456, %464 : vector<8x32xf32>
    %473 = arith.addf %471, %472 : vector<8x32xf32>
    %474 = math.tanh %473 : vector<8x32xf32>
    %475 = arith.mulf %470, %474 : vector<8x32xf32>
    %c56_151 = arith.constant 56 : index
    %c0_152 = arith.constant 0 : index
    %476 = vector.load %arg8[%c56_151, %c0_152] : memref<64x32xf32, #tpu.memory_space<vmem>>, vector<8x32xf32>
    tpu.vector_store %arg8[%c56_151, %c0_152], %475 {strides = array<i32>} : memref<64x32xf32, #tpu.memory_space<vmem>>, vector<8x32xf32>,
    %c0_153 = arith.constant 0 : index
    %c128_154 = arith.constant 128 : index
    %477 = vector.load %arg7[%c0_153, %c128_154] : memref<64x256xf32, #tpu.memory_space<vmem>>, vector<8x128xf32>
    %478 = arith.truncf %444 : vector<8x32xf32> to vector<8x32xbf16>
    %c0_155 = arith.constant 0 : index
    %c0_156 = arith.constant 0 : index
    %479 = vector.load %arg5[%c0_155, %c0_156] : memref<32x128xbf16, #tpu.memory_space<vmem>>, vector<32x128xbf16>
    %cst_157 = arith.constant dense<0.000000e+00> : vector<8x128xf32>
    %480 = tpu.matmul %478, %479, %cst_157 {dimension_numbers = #tpu.dot_dimension_numbers<[1], [0], [0], [1], [0, 0, 1, 1], [], []>} : vector<8x32xbf16>, vector<32x128xbf16>, vector<8x128xf32> -> vector<8x128xf32>
    %481 = arith.addf %477, %480 : vector<8x128xf32>
    %482 = vector.extract_strided_slice %481 {offsets = [0, 0], sizes = [8, 32], strides = [1, 1]} : vector<8x128xf32> to vector<8x32xf32>
    %483 = arith.negf %482 : vector<8x32xf32>
    %484 = math.exp %483 : vector<8x32xf32>
    %cst_158 = arith.constant 1.000000e+00 : f32
    %485 = vector.broadcast %cst_158 : f32 to vector<8x32xf32>
    %486 = arith.addf %485, %484 : vector<8x32xf32>
    %487 = arith.divf %485, %486 : vector<8x32xf32>
    %488 = vector.extract_strided_slice %481 {offsets = [0, 32], sizes = [8, 32], strides = [1, 1]} : vector<8x128xf32> to vector<8x32xf32>
    %489 = arith.negf %488 : vector<8x32xf32>
    %490 = math.exp %489 : vector<8x32xf32>
    %cst_159 = arith.constant 1.000000e+00 : f32
    %491 = vector.broadcast %cst_159 : f32 to vector<8x32xf32>
    %492 = arith.addf %491, %490 : vector<8x32xf32>
    %493 = arith.divf %491, %492 : vector<8x32xf32>
    %494 = vector.extract_strided_slice %481 {offsets = [0, 64], sizes = [8, 32], strides = [1, 1]} : vector<8x128xf32> to vector<8x32xf32>
    %495 = math.tanh %494 : vector<8x32xf32>
    %496 = vector.extract_strided_slice %481 {offsets = [0, 96], sizes = [8, 32], strides = [1, 1]} : vector<8x128xf32> to vector<8x32xf32>
    %497 = arith.negf %496 : vector<8x32xf32>
    %498 = math.exp %497 : vector<8x32xf32>
    %cst_160 = arith.constant 1.000000e+00 : f32
    %499 = vector.broadcast %cst_160 : f32 to vector<8x32xf32>
    %500 = arith.addf %499, %498 : vector<8x32xf32>
    %501 = arith.divf %499, %500 : vector<8x32xf32>
    %502 = arith.mulf %493, %442 : vector<8x32xf32>
    %503 = arith.mulf %487, %495 : vector<8x32xf32>
    %504 = arith.addf %502, %503 : vector<8x32xf32>
    %505 = math.tanh %504 : vector<8x32xf32>
    %506 = arith.mulf %501, %505 : vector<8x32xf32>
    %c0_161 = arith.constant 0 : index
    %c0_162 = arith.constant 0 : index
    %507 = vector.load %arg9[%c0_161, %c0_162] : memref<64x32xf32, #tpu.memory_space<vmem>>, vector<8x32xf32>
    tpu.vector_store %arg9[%c0_161, %c0_162], %506 {strides = array<i32>} : memref<64x32xf32, #tpu.memory_space<vmem>>, vector<8x32xf32>,
    %c0_163 = arith.constant 0 : index
    %c0_164 = arith.constant 0 : index
    %508 = vector.load %arg8[%c0_163, %c0_164] : memref<64x32xf32, #tpu.memory_space<vmem>>, vector<64x32xf32>
    %c0_165 = arith.constant 0 : index
    %c0_166 = arith.constant 0 : index
    %509 = vector.load %arg6[%c0_165, %c0_166] : memref<64x64xf32, #tpu.memory_space<vmem>>, vector<64x32xf32>
    tpu.vector_store %arg6[%c0_165, %c0_166], %508 {strides = array<i32>} : memref<64x64xf32, #tpu.memory_space<vmem>>, vector<64x32xf32>,
    %c0_167 = arith.constant 0 : index
    %c0_168 = arith.constant 0 : index
    %510 = vector.load %arg9[%c0_167, %c0_168] : memref<64x32xf32, #tpu.memory_space<vmem>>, vector<64x32xf32>
    %c0_169 = arith.constant 0 : index
    %c32_170 = arith.constant 32 : index
    %511 = vector.load %arg6[%c0_169, %c32_170] : memref<64x64xf32, #tpu.memory_space<vmem>>, vector<64x32xf32>
    tpu.vector_store %arg6[%c0_169, %c32_170], %510 {strides = array<i32>} : memref<64x64xf32, #tpu.memory_space<vmem>>, vector<64x32xf32>,
    return
  }
  func.func @transform_0(%arg0: i32) -> (i32, i32) {
    %c0_i32 = arith.constant 0 : i32
    %c0_i32_0 = arith.constant 0 : i32
    %c0_i32_1 = arith.constant 0 : i32
    return %c0_i32, %c0_i32_0 : i32, i32
  }
  func.func @transform_1(%arg0: i32) -> (i32, i32) {
    %c0_i32 = arith.constant 0 : i32
    %c0_i32_0 = arith.constant 0 : i32
    %c0_i32_1 = arith.constant 0 : i32
    return %c0_i32, %c0_i32_0 : i32, i32
  }
  func.func @transform_2(%arg0: i32) -> (i32, i32) {
    %c0_i32 = arith.constant 0 : i32
    %c0_i32_0 = arith.constant 0 : i32
    %c0_i32_1 = arith.constant 0 : i32
    return %c0_i32, %c0_i32_0 : i32, i32
  }
  func.func @transform_3(%arg0: i32) -> (i32, i32) {
    %c0_i32 = arith.constant 0 : i32
    %c0_i32_0 = arith.constant 0 : i32
    %c0_i32_1 = arith.constant 0 : i32
    return %c0_i32, %c0_i32_0 : i32, i32
  }
  func.func @transform_4(%arg0: i32) -> (i32, i32) {
    %c0_i32 = arith.constant 0 : i32
    %c0_i32_0 = arith.constant 0 : i32
    %c0_i32_1 = arith.constant 0 : i32
    return %c0_i32, %c0_i32_0 : i32, i32
  }
  func.func @transform_5(%arg0: i32) -> (i32, i32) {
    %c0_i32 = arith.constant 0 : i32
    %c0_i32_0 = arith.constant 0 : i32
    %c0_i32_1 = arith.constant 0 : i32
    return %c0_i32, %c0_i32_0 : i32, i32
  }
}

</mosaic_0001>

<llo_original>
// kernel: tpu_custom_call.1
$region0: #{tpu_custom_call.1}
  #allocation0 [shape = 'u32[]', space=smem, size = 0x4, offset = 0x4, fixed_abs, tag = 'smem constant byte address 0x4 - core index']
  #allocation1 [shape = 'u32[144,128]{1,0:T(1,128)}', space=vmem, size = 0x12000, scoped, tag = 'internal scratch']
  #allocation2 [shape = 'f32[64,256]{1,0:T(8,128)}', space=vmem, size = 0x10000, scoped, tag = 'scratch operand']
  #allocation3 [shape = 'f32[64,32]{1,0:T(8,128)}', space=vmem, size = 0x8000, scoped, tag = 'scratch operand']
  #allocation4 [shape = 'f32[64,32]{1,0:T(8,128)}', space=vmem, size = 0x8000, scoped, tag = 'scratch operand']
  %s0 = inlined_call_operand.vmem [shape: f32[64,16], index: 0, kind: input, shape index: {}]
  %s1 = inlined_call_operand.vmem [shape: bf16[16,256], index: 1, kind: input, shape index: {}]
  %s2 = inlined_call_operand.vmem [shape: f32[1,256], index: 2, kind: input, shape index: {}]
  %s3 = inlined_call_operand.vmem [shape: bf16[32,128], index: 3, kind: input, shape index: {}]
  %s4 = inlined_call_operand.vmem [shape: bf16[32,128], index: 4, kind: input, shape index: {}]
  %s5 = inlined_call_operand.hbm [shape: f32[64,64], index: 5, kind: output, shape index: {}]
  %s6 = sld [smem:[#allocation0]]
  $region30: #{tpu_custom_call.1} parent=0
    _
  %s8 = ssub.s32 1, %s6
  %s9 = scalar_select 0, %s8, %s6
  $region1: #{tpu_custom_call.1} parent=0
    #allocation5 [shape = 'u8[32768]{0}', space=vmem, size = 0x8000, scoped, tag = 'output window, operand 0, single buffered']
    #allocation6 [shape = 's32[1]{0}', space=sflag, size = 0x4, scoped, tag = 'scoped memory for tpu_custom_call.1']
    %10 = vsyncpa [#allocation6], 0
    // Predicated region
    $region2: #{tpu_custom_call.1} parent=1 // pred_check
      _
    $region3: #{tpu_custom_call.1} parent=1 // pred_check_branch
      %12 = sbr.rel (0) target = $region5
    $region4: #{tpu_custom_call.1} parent=1 // pred_region
      _
    $region5: #{tpu_custom_call.1} parent=1 // pred_fallthru
      _
    // Predicated region
    $region6: #{tpu_custom_call.1} parent=1 // pred_check
      _
    $region7: #{tpu_custom_call.1} parent=1 // pred_check_branch
      %14 = sbr.rel (0) target = $region9
    $region8: #{tpu_custom_call.1} parent=1 // pred_region
      _
    $region9: #{tpu_custom_call.1} parent=1 // pred_fallthru
      _
    // Predicated region
    $region10: #{tpu_custom_call.1} parent=1 // pred_check
      _
    $region11: #{tpu_custom_call.1} parent=1 // pred_check_branch
      %16 = sbr.rel (0) target = $region13
    $region12: #{tpu_custom_call.1} parent=1 // pred_region
      _
    $region13: #{tpu_custom_call.1} parent=1 // pred_fallthru
      _
    // Predicated region
    $region14: #{tpu_custom_call.1} parent=1 // pred_check
      _
    $region15: #{tpu_custom_call.1} parent=1 // pred_check_branch
      %18 = sbr.rel (0) target = $region17
    $region16: #{tpu_custom_call.1} parent=1 // pred_region
      _
    $region17: #{tpu_custom_call.1} parent=1 // pred_fallthru
      _
    // Predicated region
    $region18: #{tpu_custom_call.1} parent=1 // pred_check
      _
    $region19: #{tpu_custom_call.1} parent=1 // pred_check_branch
      %20 = sbr.rel (0) target = $region21
    $region20: #{tpu_custom_call.1} parent=1 // pred_region
      _
    $region21: #{tpu_custom_call.1} parent=1 // pred_fallthru
      _
    %v22 = vld [vmem:[%s0] sm:$0xff]
    %v23 = vld [vmem:[%s0 + $0x8] sm:$0xff]
    %v24 = vld [vmem:[%s0 + $0x10] sm:$0xff]
    %v25 = vld [vmem:[%s0 + $0x18] sm:$0xff]
    %v26 = vld [vmem:[%s0 + $0x20] sm:$0xff]
    %v27 = vld [vmem:[%s0 + $0x28] sm:$0xff]
    %v28 = vld [vmem:[%s0 + $0x30] sm:$0xff]
    %v29 = vld [vmem:[%s0 + $0x38] sm:$0xff]
    %v30 = vpack.c.bf16 %v23, %v22
    %v31 = vpack.c.bf16 %v25, %v24
    %v32 = vpack.c.bf16 %v27, %v26
    %v33 = vpack.c.bf16 %v29, %v28
    %v34 = vld [vmem:[%s1] sm:$0xff]
    %v35 = vld [vmem:[%s1 + $0x8] sm:$0xff]
    %v36 = vld [vmem:[%s2] sm:$0x3]
    %v38 = vlaneseq
    %v39 = vshrl.u32 %v38, 7
    %v40 = vsub.s32 0, %v39
    %v41 = vrot.slane %v36, %v40
    %v42 = vlaneseq
    %v43 = vshrl.u32 %v42, 7
    %v44 = vsub.s32 1, %v43
    %v45 = vrot.slane %v36, %v44
    %v50 = vunpack.c.l.b16 %v34
    %v51 = vunpack.c.h.b16 %v34
    %v52 = vunpack.c.l.b16 %v35
    %v53 = vunpack.c.h.b16 %v35
    %v54 = vpack.c.b16 %v52, %v50
    %v55 = vpack.c.b16 %v53, %v51
    %vm58 = vcmask 130048
    %v60 = vsel %vm58, %v30, 0
    %v63 = vsel %vm58, %v31, 0
    %v66 = vsel %vm58, %v32, 0
    %v69 = vsel %vm58, %v33, 0
    %71 = vmatprep.subr.bf16.mxu0 0
    %72 = vmatpush1.bf16.msra.mxu0 0
    %73 = vmatprep.subr.bf16.mxu0 0
    %74 = vmatpush1.bf16.msra.mxu0 0
    %75 = vmatprep.subr.bf16.mxu0 0
    %76 = vmatpush1.bf16.msra.mxu0 0
    %77 = vmatprep.subr.bf16.mxu0 0
    %78 = vmatpush1.bf16.msra.mxu0 0
    %79 = vmatprep.subr.bf16.mxu0 0
    %80 = vmatpush1.bf16.msra.mxu0 0
    %81 = vmatprep.subr.bf16.mxu0 0
    %82 = vmatpush1.bf16.msra.mxu0 0
    %83 = vmatprep.subr.bf16.mxu0 0
    %84 = vmatpush1.bf16.msra.mxu0 0
    %85 = vmatprep.subr.bf16.mxu0 %v55
    %86 = vmatpush1.bf16.msra.mxu0 %v54
    %87 = vmatprep.subr.bf16.mxu0 0
    %88 = vmatpush2.bf16.msra.mxu0 0
    %89 = vmatprep.subr.bf16.mxu0 0
    %90 = vmatpush2.bf16.msra.mxu0 0
    %91 = vmatprep.subr.bf16.mxu0 0
    %92 = vmatpush2.bf16.msra.mxu0 0
    %93 = vmatprep.subr.bf16.mxu0 0
    %94 = vmatpush2.bf16.msra.mxu0 0
    %95 = vmatprep.subr.bf16.mxu0 0
    %96 = vmatpush2.bf16.msra.mxu0 0
    %97 = vmatprep.subr.bf16.mxu0 0
    %98 = vmatpush2.bf16.msra.mxu0 0
    %99 = vmatprep.subr.bf16.mxu0 0
    %100 = vmatpush2.bf16.msra.mxu0 0
    %101 = vmatprep.subr.bf16.mxu0 0
    %102 = vmatpush2.bf16.msra.mxu0 0
    %103 = vmatprep.mubr.bf16.mxu0 0
    %104 = vmatmul.mubr.bf16.gmra.mxu0 %v60
    %v105 = vpop.f32.mrf.mxu0
    %v106 = vadd.f32 %v41, %v105
    %v107 = vpop.f32.mrf.mxu0
    %v108 = vadd.f32 %v45, %v107
    %v109 = vpop.f32.mrf.mxu0
    %v110 = vadd.f32 %v41, %v109
    %v111 = vpop.f32.mrf.mxu0
    %v112 = vadd.f32 %v45, %v111
    %113 = vmatprep.mubr.bf16.mxu0 0
    %114 = vmatmul.mubr.bf16.gmra.mxu0 %v63
    %v115 = vpop.f32.mrf.mxu0
    %v116 = vadd.f32 %v41, %v115
    %v117 = vpop.f32.mrf.mxu0
    %v118 = vadd.f32 %v45, %v117
    %v119 = vpop.f32.mrf.mxu0
    %v120 = vadd.f32 %v41, %v119
    %v121 = vpop.f32.mrf.mxu0
    %v122 = vadd.f32 %v45, %v121
    %123 = vmatprep.mubr.bf16.mxu0 0
    %124 = vmatmul.mubr.bf16.gmra.mxu0 %v66
    %v125 = vpop.f32.mrf.mxu0
    %v126 = vadd.f32 %v41, %v125
    %v127 = vpop.f32.mrf.mxu0
    %v128 = vadd.f32 %v45, %v127
    %v129 = vpop.f32.mrf.mxu0
    %v130 = vadd.f32 %v41, %v129
    %v131 = vpop.f32.mrf.mxu0
    %v132 = vadd.f32 %v45, %v131
    %133 = vmatprep.mubr.bf16.mxu0 0
    %134 = vmatmul.mubr.bf16.gmra.mxu0 %v69
    %v135 = vpop.f32.mrf.mxu0
    %v136 = vadd.f32 %v41, %v135
    %v137 = vpop.f32.mrf.mxu0
    %v138 = vadd.f32 %v45, %v137
    %v139 = vpop.f32.mrf.mxu0
    %v140 = vadd.f32 %v41, %v139
    %v141 = vpop.f32.mrf.mxu0
    %v142 = vadd.f32 %v45, %v141
    %143 = vdwg.mxu0
    %144 = vst [vmem:[#allocation2] sm:$0xff] %v106
    %145 = vst [vmem:[#allocation2 + $0x8] sm:$0xff] %v108
    %146 = vst [vmem:[#allocation2 + $0x10] sm:$0xff] %v110
    %147 = vst [vmem:[#allocation2 + $0x18] sm:$0xff] %v112
    %148 = vst [vmem:[#allocation2 + $0x20] sm:$0xff] %v116
    %149 = vst [vmem:[#allocation2 + $0x28] sm:$0xff] %v118
    %150 = vst [vmem:[#allocation2 + $0x30] sm:$0xff] %v120
    %151 = vst [vmem:[#allocation2 + $0x38] sm:$0xff] %v122
    %152 = vst [vmem:[#allocation2 + $0x40] sm:$0xff] %v126
    %153 = vst [vmem:[#allocation2 + $0x48] sm:$0xff] %v128
    %154 = vst [vmem:[#allocation2 + $0x50] sm:$0xff] %v130
    %155 = vst [vmem:[#allocation2 + $0x58] sm:$0xff] %v132
    %156 = vst [vmem:[#allocation2 + $0x60] sm:$0xff] %v136
    %157 = vst [vmem:[#allocation2 + $0x68] sm:$0xff] %v138
    %158 = vst [vmem:[#allocation2 + $0x70] sm:$0xff] %v140
    %159 = vst [vmem:[#allocation2 + $0x78] sm:$0xff] %v142
    %v160 = vld [vmem:[#allocation2] sm:$0xff]
    %v161 = vld [vmem:[%s3] sm:$0xf]
    %v162 = vld [vmem:[%s3 + $0x4] sm:$0xf]
    %v163 = vld [vmem:[%s3 + $0x8] sm:$0xf]
    %v164 = vld [vmem:[%s3 + $0xc] sm:$0xf]
    %v169 = vunpack.c.l.b16 %v161
    %v170 = vunpack.c.l.b16 %v162
    %v171 = vunpack.c.l.b16 %v163
    %v172 = vunpack.c.l.b16 %v164
    %v173 = vpack.c.b16 %v170, %v169
    %v174 = vpack.c.b16 %v172, %v171
    %vm177 = vcmask 261120
    %v179 = vsel %vm177, 0, 0
    %181 = vmatprep.subr.bf16.mxu0 0
    %182 = vmatpush1.bf16.msra.mxu0 0
    %183 = vmatprep.subr.bf16.mxu0 0
    %184 = vmatpush1.bf16.msra.mxu0 0
    %185 = vmatprep.subr.bf16.mxu0 0
    %186 = vmatpush1.bf16.msra.mxu0 0
    %187 = vmatprep.subr.bf16.mxu0 0
    %188 = vmatpush1.bf16.msra.mxu0 0
    %189 = vmatprep.subr.bf16.mxu0 0
    %190 = vmatpush1.bf16.msra.mxu0 0
    %191 = vmatprep.subr.bf16.mxu0 0
    %192 = vmatpush1.bf16.msra.mxu0 0
    %193 = vmatprep.subr.bf16.mxu0 0
    %194 = vmatpush1.bf16.msra.mxu0 %v174
    %195 = vmatprep.subr.bf16.mxu0 0
    %196 = vmatpush1.bf16.msra.mxu0 %v173
    %197 = vmatprep.subr.bf16.mxu0 0
    %198 = vmatpush2.bf16.msra.mxu0 0
    %199 = vmatprep.subr.bf16.mxu0 0
    %200 = vmatpush2.bf16.msra.mxu0 0
    %201 = vmatprep.subr.bf16.mxu0 0
    %202 = vmatpush2.bf16.msra.mxu0 0
    %203 = vmatprep.subr.bf16.mxu0 0
    %204 = vmatpush2.bf16.msra.mxu0 0
    %205 = vmatprep.subr.bf16.mxu0 0
    %206 = vmatpush2.bf16.msra.mxu0 0
    %207 = vmatprep.subr.bf16.mxu0 0
    %208 = vmatpush2.bf16.msra.mxu0 0
    %209 = vmatprep.subr.bf16.mxu0 0
    %210 = vmatpush2.bf16.msra.mxu0 0
    %211 = vmatprep.subr.bf16.mxu0 0
    %212 = vmatpush2.bf16.msra.mxu0 0
    %213 = vmatprep.mubr.bf16.mxu0 0
    %214 = vmatmul.mubr.bf16.gmra.mxu0 %v179
    %v215 = vpop.f32.mrf.mxu0
    %v216 = vadd.f32 0.0, %v215
    %v217 = vpop.f32.mrf.mxu0
    %v218 = vpop.f32.mrf.mxu0
    %v219 = vpop.f32.mrf.mxu0
    %220 = vdwg.mxu0
    %v221 = vadd.f32 %v160, %v216
    %v222 = vxor.u32 %v221, 2147483648
    %v223 = vmul.f32 %v222, 1.442695
    %v224 = vpow.pop %v223
    %v225 = vadd.f32 %v224, 1.0
    %v226 = vrcp.pop %v225
    %v227 = vmul.f32 1.0, %v226
    %v228 = vtanh.pop %v221
    %v229 = vmul.f32 %v227, 0.0
    %231 = vrot.lane.b32.xlu0 %v228, 64
    %v232 = vpop.permute.xlu0 %231
    %v234 = vmul.f32 %v227, %v232
    %236 = vrot.lane.b32.xlu0 %v234, 32
    %v237 = vpop.permute.xlu0 %236
    %v239 = vadd.f32 %v229, %v237
    %v240 = vtanh.pop %v239
    %242 = vrot.lane.b32.xlu0 %v240, 64
    %v243 = vpop.permute.xlu0 %242
    %v245 = vmul.f32 %v227, %v243
    %247 = vrot.lane.b32.xlu0 %v245, 32
    %v248 = vpop.permute.xlu0 %247
    %250 = vst.msk [vmem:[#allocation3] sm:$0xff] %vm177, %v248
    %v251 = vld [vmem:[#allocation2 + $0x78] sm:$0xff]
    %v252 = vld [vmem:[%s4] sm:$0xf]
    %v253 = vld [vmem:[%s4 + $0x4] sm:$0xf]
    %v254 = vld [vmem:[%s4 + $0x8] sm:$0xf]
    %v255 = vld [vmem:[%s4 + $0xc] sm:$0xf]
    %v260 = vunpack.c.l.b16 %v252
    %v261 = vunpack.c.l.b16 %v253
    %v262 = vunpack.c.l.b16 %v254
    %v263 = vunpack.c.l.b16 %v255
    %v264 = vpack.c.b16 %v261, %v260
    %v265 = vpack.c.b16 %v263, %v262
    %268 = vmatprep.subr.bf16.mxu0 0
    %269 = vmatpush1.bf16.msra.mxu0 0
    %270 = vmatprep.subr.bf16.mxu0 0
    %271 = vmatpush1.bf16.msra.mxu0 0
    %272 = vmatprep.subr.bf16.mxu0 0
    %273 = vmatpush1.bf16.msra.mxu0 0
    %274 = vmatprep.subr.bf16.mxu0 0
    %275 = vmatpush1.bf16.msra.mxu0 0
    %276 = vmatprep.subr.bf16.mxu0 0
    %277 = vmatpush1.bf16.msra.mxu0 0
    %278 = vmatprep.subr.bf16.mxu0 0
    %279 = vmatpush1.bf16.msra.mxu0 0
    %280 = vmatprep.subr.bf16.mxu0 0
    %281 = vmatpush1.bf16.msra.mxu0 %v265
    %282 = vmatprep.subr.bf16.mxu0 0
    %283 = vmatpush1.bf16.msra.mxu0 %v264
    %284 = vmatprep.subr.bf16.mxu0 0
    %285 = vmatpush2.bf16.msra.mxu0 0
    %286 = vmatprep.subr.bf16.mxu0 0
    %287 = vmatpush2.bf16.msra.mxu0 0
    %288 = vmatprep.subr.bf16.mxu0 0
    %289 = vmatpush2.bf16.msra.mxu0 0
    %290 = vmatprep.subr.bf16.mxu0 0
    %291 = vmatpush2.bf16.msra.mxu0 0
    %292 = vmatprep.subr.bf16.mxu0 0
    %293 = vmatpush2.bf16.msra.mxu0 0
    %294 = vmatprep.subr.bf16.mxu0 0
    %295 = vmatpush2.bf16.msra.mxu0 0
    %296 = vmatprep.subr.bf16.mxu0 0
    %297 = vmatpush2.bf16.msra.mxu0 0
    %298 = vmatprep.subr.bf16.mxu0 0
    %299 = vmatpush2.bf16.msra.mxu0 0
    %300 = vmatprep.mubr.bf16.mxu0 0
    %301 = vmatmul.mubr.bf16.gmra.mxu0 %v179
    %v302 = vpop.f32.mrf.mxu0
    %v303 = vadd.f32 0.0, %v302
    %v304 = vpop.f32.mrf.mxu0
    %v305 = vpop.f32.mrf.mxu0
    %v306 = vpop.f32.mrf.mxu0
    %307 = vdwg.mxu0
    %v308 = vadd.f32 %v251, %v303
    %v309 = vxor.u32 %v308, 2147483648
    %v310 = vmul.f32 %v309, 1.442695
    %v311 = vpow.pop %v310
    %v312 = vadd.f32 %v311, 1.0
    %v313 = vrcp.pop %v312
    %v314 = vmul.f32 1.0, %v313
    %v315 = vtanh.pop %v308
    %v316 = vmul.f32 %v314, 0.0
    %318 = vrot.lane.b32.xlu0 %v315, 64
    %v319 = vpop.permute.xlu0 %318
    %v321 = vmul.f32 %v314, %v319
    %323 = vrot.lane.b32.xlu0 %v321, 32
    %v324 = vpop.permute.xlu0 %323
    %v326 = vadd.f32 %v316, %v324
    %v327 = vtanh.pop %v326
    %329 = vrot.lane.b32.xlu0 %v327, 64
    %v330 = vpop.permute.xlu0 %329
    %v332 = vmul.f32 %v314, %v330
    %334 = vrot.lane.b32.xlu0 %v332, 32
    %v335 = vpop.permute.xlu0 %334
    %337 = vst.msk [vmem:[#allocation4 + $0x38] sm:$0xff] %vm177, %v335
    %v338 = vld [vmem:[#allocation2 + $0x10] sm:$0xff]
    %v339 = vpack.c.bf16 %v245, %v245
    %v340 = vld [vmem:[%s3] sm:$0xf]
    %v341 = vld [vmem:[%s3 + $0x4] sm:$0xf]
    %v342 = vld [vmem:[%s3 + $0x8] sm:$0xf]
    %v343 = vld [vmem:[%s3 + $0xc] sm:$0xf]
    %345 = vrot.lane.b32.xlu0 %v339, 32
    %v346 = vpop.permute.xlu0 %345
    %v351 = vunpack.c.l.b16 %v340
    %v352 = vunpack.c.l.b16 %v341
    %v353 = vunpack.c.l.b16 %v342
    %v354 = vunpack.c.l.b16 %v343
    %v355 = vpack.c.b16 %v352, %v351
    %v356 = vpack.c.b16 %v354, %v353
    %v360 = vsel %vm177, %v346, 0
    %362 = vmatprep.subr.bf16.mxu0 0
    %363 = vmatpush1.bf16.msra.mxu0 0
    %364 = vmatprep.subr.bf16.mxu0 0
    %365 = vmatpush1.bf16.msra.mxu0 0
    %366 = vmatprep.subr.bf16.mxu0 0
    %367 = vmatpush1.bf16.msra.mxu0 0
    %368 = vmatprep.subr.bf16.mxu0 0
    %369 = vmatpush1.bf16.msra.mxu0 0
    %370 = vmatprep.subr.bf16.mxu0 0
    %371 = vmatpush1.bf16.msra.mxu0 0
    %372 = vmatprep.subr.bf16.mxu0 0
    %373 = vmatpush1.bf16.msra.mxu0 0
    %374 = vmatprep.subr.bf16.mxu0 0
    %375 = vmatpush1.bf16.msra.mxu0 %v356
    %376 = vmatprep.subr.bf16.mxu0 0
    %377 = vmatpush1.bf16.msra.mxu0 %v355
    %378 = vmatprep.subr.bf16.mxu0 0
    %379 = vmatpush2.bf16.msra.mxu0 0
    %380 = vmatprep.subr.bf16.mxu0 0
    %381 = vmatpush2.bf16.msra.mxu0 0
    %382 = vmatprep.subr.bf16.mxu0 0
    %383 = vmatpush2.bf16.msra.mxu0 0
    %384 = vmatprep.subr.bf16.mxu0 0
    %385 = vmatpush2.bf16.msra.mxu0 0
    %386 = vmatprep.subr.bf16.mxu0 0
    %387 = vmatpush2.bf16.msra.mxu0 0
    %388 = vmatprep.subr.bf16.mxu0 0
    %389 = vmatpush2.bf16.msra.mxu0 0
    %390 = vmatprep.subr.bf16.mxu0 0
    %391 = vmatpush2.bf16.msra.mxu0 0
    %392 = vmatprep.subr.bf16.mxu0 0
    %393 = vmatpush2.bf16.msra.mxu0 0
    %394 = vmatprep.mubr.bf16.mxu0 0
    %395 = vmatmul.mubr.bf16.gmra.mxu0 %v360
    %v396 = vpop.f32.mrf.mxu0
    %v397 = vadd.f32 0.0, %v396
    %v398 = vpop.f32.mrf.mxu0
    %v399 = vpop.f32.mrf.mxu0
    %v400 = vpop.f32.mrf.mxu0
    %401 = vdwg.mxu0
    %v402 = vadd.f32 %v338, %v397
    %v403 = vxor.u32 %v402, 2147483648
    %v404 = vmul.f32 %v403, 1.442695
    %v405 = vpow.pop %v404
    %v406 = vadd.f32 %v405, 1.0
    %v407 = vrcp.pop %v406
    %v408 = vmul.f32 1.0, %v407
    %v409 = vtanh.pop %v402
    %v410 = vmul.f32 %v408, %v239
    %412 = vrot.lane.b32.xlu0 %v409, 64
    %v413 = vpop.permute.xlu0 %412
    %v415 = vmul.f32 %v408, %v413
    %417 = vrot.lane.b32.xlu0 %v415, 32
    %v418 = vpop.permute.xlu0 %417
    %v420 = vadd.f32 %v410, %v418
    %v421 = vtanh.pop %v420
    %423 = vrot.lane.b32.xlu0 %v421, 64
    %v424 = vpop.permute.xlu0 %423
    %v426 = vmul.f32 %v408, %v424
    %428 = vrot.lane.b32.xlu0 %v426, 32
    %v429 = vpop.permute.xlu0 %428
    %431 = vst.msk [vmem:[#allocation3 + $0x8] sm:$0xff] %vm177, %v429
    %v432 = vld [vmem:[#allocation2 + $0x68] sm:$0xff]
    %v433 = vpack.c.bf16 %v332, %v332
    %v434 = vld [vmem:[%s4] sm:$0xf]
    %v435 = vld [vmem:[%s4 + $0x4] sm:$0xf]
    %v436 = vld [vmem:[%s4 + $0x8] sm:$0xf]
    %v437 = vld [vmem:[%s4 + $0xc] sm:$0xf]
    %439 = vrot.lane.b32.xlu0 %v433, 32
    %v440 = vpop.permute.xlu0 %439
    %v445 = vunpack.c.l.b16 %v434
    %v446 = vunpack.c.l.b16 %v435
    %v447 = vunpack.c.l.b16 %v436
    %v448 = vunpack.c.l.b16 %v437
    %v449 = vpack.c.b16 %v446, %v445
    %v450 = vpack.c.b16 %v448, %v447
    %v454 = vsel %vm177, %v440, 0
    %456 = vmatprep.subr.bf16.mxu0 0
    %457 = vmatpush1.bf16.msra.mxu0 0
    %458 = vmatprep.subr.bf16.mxu0 0
    %459 = vmatpush1.bf16.msra.mxu0 0
    %460 = vmatprep.subr.bf16.mxu0 0
    %461 = vmatpush1.bf16.msra.mxu0 0
    %462 = vmatprep.subr.bf16.mxu0 0
    %463 = vmatpush1.bf16.msra.mxu0 0
    %464 = vmatprep.subr.bf16.mxu0 0
    %465 = vmatpush1.bf16.msra.mxu0 0
    %466 = vmatprep.subr.bf16.mxu0 0
    %467 = vmatpush1.bf16.msra.mxu0 0
    %468 = vmatprep.subr.bf16.mxu0 0
    %469 = vmatpush1.bf16.msra.mxu0 %v450
    %470 = vmatprep.subr.bf16.mxu0 0
    %471 = vmatpush1.bf16.msra.mxu0 %v449
    %472 = vmatprep.subr.bf16.mxu0 0
    %473 = vmatpush2.bf16.msra.mxu0 0
    %474 = vmatprep.subr.bf16.mxu0 0
    %475 = vmatpush2.bf16.msra.mxu0 0
    %476 = vmatprep.subr.bf16.mxu0 0
    %477 = vmatpush2.bf16.msra.mxu0 0
    %478 = vmatprep.subr.bf16.mxu0 0
    %479 = vmatpush2.bf16.msra.mxu0 0
    %480 = vmatprep.subr.bf16.mxu0 0
    %481 = vmatpush2.bf16.msra.mxu0 0
    %482 = vmatprep.subr.bf16.mxu0 0
    %483 = vmatpush2.bf16.msra.mxu0 0
    %484 = vmatprep.subr.bf16.mxu0 0
    %485 = vmatpush2.bf16.msra.mxu0 0
    %486 = vmatprep.subr.bf16.mxu0 0
    %487 = vmatpush2.bf16.msra.mxu0 0
    %488 = vmatprep.mubr.bf16.mxu0 0
    %489 = vmatmul.mubr.bf16.gmra.mxu0 %v454
    %v490 = vpop.f32.mrf.mxu0
    %v491 = vadd.f32 0.0, %v490
    %v492 = vpop.f32.mrf.mxu0
    %v493 = vpop.f32.mrf.mxu0
    %v494 = vpop.f32.mrf.mxu0
    %495 = vdwg.mxu0
    %v496 = vadd.f32 %v432, %v491
    %v497 = vxor.u32 %v496, 2147483648
    %v498 = vmul.f32 %v497, 1.442695
    %v499 = vpow.pop %v498
    %v500 = vadd.f32 %v499, 1.0
    %v501 = vrcp.pop %v500
    %v502 = vmul.f32 1.0, %v501
    %v503 = vtanh.pop %v496
    %v504 = vmul.f32 %v502, %v326
    %506 = vrot.lane.b32.xlu0 %v503, 64
    %v507 = vpop.permute.xlu0 %506
    %v509 = vmul.f32 %v502, %v507
    %511 = vrot.lane.b32.xlu0 %v509, 32
    %v512 = vpop.permute.xlu0 %511
    %v514 = vadd.f32 %v504, %v512
    %v515 = vtanh.pop %v514
    %517 = vrot.lane.b32.xlu0 %v515, 64
    %v518 = vpop.permute.xlu0 %517
    %v520 = vmul.f32 %v502, %v518
    %522 = vrot.lane.b32.xlu0 %v520, 32
    %v523 = vpop.permute.xlu0 %522
    %525 = vst.msk [vmem:[#allocation4 + $0x30] sm:$0xff] %vm177, %v523
    %v526 = vld [vmem:[#allocation2 + $0x20] sm:$0xff]
    %v527 = vpack.c.bf16 %v426, %v426
    %v528 = vld [vmem:[%s3] sm:$0xf]
    %v529 = vld [vmem:[%s3 + $0x4] sm:$0xf]
    %v530 = vld [vmem:[%s3 + $0x8] sm:$0xf]
    %v531 = vld [vmem:[%s3 + $0xc] sm:$0xf]
    %533 = vrot.lane.b32.xlu0 %v527, 32
    %v534 = vpop.permute.xlu0 %533
    %v539 = vunpack.c.l.b16 %v528
    %v540 = vunpack.c.l.b16 %v529
    %v541 = vunpack.c.l.b16 %v530
    %v542 = vunpack.c.l.b16 %v531
    %v543 = vpack.c.b16 %v540, %v539
    %v544 = vpack.c.b16 %v542, %v541
    %v548 = vsel %vm177, %v534, 0
    %550 = vmatprep.subr.bf16.mxu0 0
    %551 = vmatpush1.bf16.msra.mxu0 0
    %552 = vmatprep.subr.bf16.mxu0 0
    %553 = vmatpush1.bf16.msra.mxu0 0
    %554 = vmatprep.subr.bf16.mxu0 0
    %555 = vmatpush1.bf16.msra.mxu0 0
    %556 = vmatprep.subr.bf16.mxu0 0
    %557 = vmatpush1.bf16.msra.mxu0 0
    %558 = vmatprep.subr.bf16.mxu0 0
    %559 = vmatpush1.bf16.msra.mxu0 0
    %560 = vmatprep.subr.bf16.mxu0 0
    %561 = vmatpush1.bf16.msra.mxu0 0
    %562 = vmatprep.subr.bf16.mxu0 0
    %563 = vmatpush1.bf16.msra.mxu0 %v544
    %564 = vmatprep.subr.bf16.mxu0 0
    %565 = vmatpush1.bf16.msra.mxu0 %v543
    %566 = vmatprep.subr.bf16.mxu0 0
    %567 = vmatpush2.bf16.msra.mxu0 0
    %568 = vmatprep.subr.bf16.mxu0 0
    %569 = vmatpush2.bf16.msra.mxu0 0
    %570 = vmatprep.subr.bf16.mxu0 0
    %571 = vmatpush2.bf16.msra.mxu0 0
    %572 = vmatprep.subr.bf16.mxu0 0
    %573 = vmatpush2.bf16.msra.mxu0 0
    %574 = vmatprep.subr.bf16.mxu0 0
    %575 = vmatpush2.bf16.msra.mxu0 0
    %576 = vmatprep.subr.bf16.mxu0 0
    %577 = vmatpush2.bf16.msra.mxu0 0
    %578 = vmatprep.subr.bf16.mxu0 0
    %579 = vmatpush2.bf16.msra.mxu0 0
    %580 = vmatprep.subr.bf16.mxu0 0
    %581 = vmatpush2.bf16.msra.mxu0 0
    %582 = vmatprep.mubr.bf16.mxu0 0
    %583 = vmatmul.mubr.bf16.gmra.mxu0 %v548
    %v584 = vpop.f32.mrf.mxu0
    %v585 = vadd.f32 0.0, %v584
    %v586 = vpop.f32.mrf.mxu0
    %v587 = vpop.f32.mrf.mxu0
    %v588 = vpop.f32.mrf.mxu0
    %589 = vdwg.mxu0
    %v590 = vadd.f32 %v526, %v585
    %v591 = vxor.u32 %v590, 2147483648
    %v592 = vmul.f32 %v591, 1.442695
    %v593 = vpow.pop %v592
    %v594 = vadd.f32 %v593, 1.0
    %v595 = vrcp.pop %v594
    %v596 = vmul.f32 1.0, %v595
    %v597 = vtanh.pop %v590
    %v598 = vmul.f32 %v596, %v420
    %600 = vrot.lane.b32.xlu0 %v597, 64
    %v601 = vpop.permute.xlu0 %600
    %v603 = vmul.f32 %v596, %v601
    %605 = vrot.lane.b32.xlu0 %v603, 32
    %v606 = vpop.permute.xlu0 %605
    %v608 = vadd.f32 %v598, %v606
    %v609 = vtanh.pop %v608
    %611 = vrot.lane.b32.xlu0 %v609, 64
    %v612 = vpop.permute.xlu0 %611
    %v614 = vmul.f32 %v596, %v612
    %616 = vrot.lane.b32.xlu0 %v614, 32
    %v617 = vpop.permute.xlu0 %616
    %619 = vst.msk [vmem:[#allocation3 + $0x10] sm:$0xff] %vm177, %v617
    %v620 = vld [vmem:[#allocation2 + $0x58] sm:$0xff]
    %v621 = vpack.c.bf16 %v520, %v520
    %v622 = vld [vmem:[%s4] sm:$0xf]
    %v623 = vld [vmem:[%s4 + $0x4] sm:$0xf]
    %v624 = vld [vmem:[%s4 + $0x8] sm:$0xf]
    %v625 = vld [vmem:[%s4 + $0xc] sm:$0xf]
    %627 = vrot.lane.b32.xlu0 %v621, 32
    %v628 = vpop.permute.xlu0 %627
    %v633 = vunpack.c.l.b16 %v622
    %v634 = vunpack.c.l.b16 %v623
    %v635 = vunpack.c.l.b16 %v624
    %v636 = vunpack.c.l.b16 %v625
    %v637 = vpack.c.b16 %v634, %v633
    %v638 = vpack.c.b16 %v636, %v635
    %v642 = vsel %vm177, %v628, 0
    %644 = vmatprep.subr.bf16.mxu0 0
    %645 = vmatpush1.bf16.msra.mxu0 0
    %646 = vmatprep.subr.bf16.mxu0 0
    %647 = vmatpush1.bf16.msra.mxu0 0
    %648 = vmatprep.subr.bf16.mxu0 0
    %649 = vmatpush1.bf16.msra.mxu0 0
    %650 = vmatprep.subr.bf16.mxu0 0
    %651 = vmatpush1.bf16.msra.mxu0 0
    %652 = vmatprep.subr.bf16.mxu0 0
    %653 = vmatpush1.bf16.msra.mxu0 0
    %654 = vmatprep.subr.bf16.mxu0 0
    %655 = vmatpush1.bf16.msra.mxu0 0
    %656 = vmatprep.subr.bf16.mxu0 0
    %657 = vmatpush1.bf16.msra.mxu0 %v638
    %658 = vmatprep.subr.bf16.mxu0 0
    %659 = vmatpush1.bf16.msra.mxu0 %v637
    %660 = vmatprep.subr.bf16.mxu0 0
    %661 = vmatpush2.bf16.msra.mxu0 0
    %662 = vmatprep.subr.bf16.mxu0 0
    %663 = vmatpush2.bf16.msra.mxu0 0
    %664 = vmatprep.subr.bf16.mxu0 0
    %665 = vmatpush2.bf16.msra.mxu0 0
    %666 = vmatprep.subr.bf16.mxu0 0
    %667 = vmatpush2.bf16.msra.mxu0 0
    %668 = vmatprep.subr.bf16.mxu0 0
    %669 = vmatpush2.bf16.msra.mxu0 0
    %670 = vmatprep.subr.bf16.mxu0 0
    %671 = vmatpush2.bf16.msra.mxu0 0
    %672 = vmatprep.subr.bf16.mxu0 0
    %673 = vmatpush2.bf16.msra.mxu0 0
    %674 = vmatprep.subr.bf16.mxu0 0
    %675 = vmatpush2.bf16.msra.mxu0 0
    %676 = vmatprep.mubr.bf16.mxu0 0
    %677 = vmatmul.mubr.bf16.gmra.mxu0 %v642
    %v678 = vpop.f32.mrf.mxu0
    %v679 = vadd.f32 0.0, %v678
    %v680 = vpop.f32.mrf.mxu0
    %v681 = vpop.f32.mrf.mxu0
    %v682 = vpop.f32.mrf.mxu0
    %683 = vdwg.mxu0
    %v684 = vadd.f32 %v620, %v679
    %v685 = vxor.u32 %v684, 2147483648
    %v686 = vmul.f32 %v685, 1.442695
    %v687 = vpow.pop %v686
    %v688 = vadd.f32 %v687, 1.0
    %v689 = vrcp.pop %v688
    %v690 = vmul.f32 1.0, %v689
    %v691 = vtanh.pop %v684
    %v692 = vmul.f32 %v690, %v514
    %694 = vrot.lane.b32.xlu0 %v691, 64
    %v695 = vpop.permute.xlu0 %694
    %v697 = vmul.f32 %v690, %v695
    %699 = vrot.lane.b32.xlu0 %v697, 32
    %v700 = vpop.permute.xlu0 %699
    %v702 = vadd.f32 %v692, %v700
    %v703 = vtanh.pop %v702
    %705 = vrot.lane.b32.xlu0 %v703, 64
    %v706 = vpop.permute.xlu0 %705
    %v708 = vmul.f32 %v690, %v706
    %710 = vrot.lane.b32.xlu0 %v708, 32
    %v711 = vpop.permute.xlu0 %710
    %713 = vst.msk [vmem:[#allocation4 + $0x28] sm:$0xff] %vm177, %v711
    %v714 = vld [vmem:[#allocation2 + $0x30] sm:$0xff]
    %v715 = vpack.c.bf16 %v614, %v614
    %v716 = vld [vmem:[%s3] sm:$0xf]
    %v717 = vld [vmem:[%s3 + $0x4] sm:$0xf]
    %v718 = vld [vmem:[%s3 + $0x8] sm:$0xf]
    %v719 = vld [vmem:[%s3 + $0xc] sm:$0xf]
    %721 = vrot.lane.b32.xlu0 %v715, 32
    %v722 = vpop.permute.xlu0 %721
    %v727 = vunpack.c.l.b16 %v716
    %v728 = vunpack.c.l.b16 %v717
    %v729 = vunpack.c.l.b16 %v718
    %v730 = vunpack.c.l.b16 %v719
    %v731 = vpack.c.b16 %v728, %v727
    %v732 = vpack.c.b16 %v730, %v729
    %v736 = vsel %vm177, %v722, 0
    %738 = vmatprep.subr.bf16.mxu0 0
    %739 = vmatpush1.bf16.msra.mxu0 0
    %740 = vmatprep.subr.bf16.mxu0 0
    %741 = vmatpush1.bf16.msra.mxu0 0
    %742 = vmatprep.subr.bf16.mxu0 0
    %743 = vmatpush1.bf16.msra.mxu0 0
    %744 = vmatprep.subr.bf16.mxu0 0
    %745 = vmatpush1.bf16.msra.mxu0 0
    %746 = vmatprep.subr.bf16.mxu0 0
    %747 = vmatpush1.bf16.msra.mxu0 0
    %748 = vmatprep.subr.bf16.mxu0 0
    %749 = vmatpush1.bf16.msra.mxu0 0
    %750 = vmatprep.subr.bf16.mxu0 0
    %751 = vmatpush1.bf16.msra.mxu0 %v732
    %752 = vmatprep.subr.bf16.mxu0 0
    %753 = vmatpush1.bf16.msra.mxu0 %v731
    %754 = vmatprep.subr.bf16.mxu0 0
    %755 = vmatpush2.bf16.msra.mxu0 0
    %756 = vmatprep.subr.bf16.mxu0 0
    %757 = vmatpush2.bf16.msra.mxu0 0
    %758 = vmatprep.subr.bf16.mxu0 0
    %759 = vmatpush2.bf16.msra.mxu0 0
    %760 = vmatprep.subr.bf16.mxu0 0
    %761 = vmatpush2.bf16.msra.mxu0 0
    %762 = vmatprep.subr.bf16.mxu0 0
    %763 = vmatpush2.bf16.msra.mxu0 0
    %764 = vmatprep.subr.bf16.mxu0 0
    %765 = vmatpush2.bf16.msra.mxu0 0
    %766 = vmatprep.subr.bf16.mxu0 0
    %767 = vmatpush2.bf16.msra.mxu0 0
    %768 = vmatprep.subr.bf16.mxu0 0
    %769 = vmatpush2.bf16.msra.mxu0 0
    %770 = vmatprep.mubr.bf16.mxu0 0
    %771 = vmatmul.mubr.bf16.gmra.mxu0 %v736
    %v772 = vpop.f32.mrf.mxu0
    %v773 = vadd.f32 0.0, %v772
    %v774 = vpop.f32.mrf.mxu0
    %v775 = vpop.f32.mrf.mxu0
    %v776 = vpop.f32.mrf.mxu0
    %777 = vdwg.mxu0
    %v778 = vadd.f32 %v714, %v773
    %v779 = vxor.u32 %v778, 2147483648
    %v780 = vmul.f32 %v779, 1.442695
    %v781 = vpow.pop %v780
    %v782 = vadd.f32 %v781, 1.0
    %v783 = vrcp.pop %v782
    %v784 = vmul.f32 1.0, %v783
    %v785 = vtanh.pop %v778
    %v786 = vmul.f32 %v784, %v608
    %788 = vrot.lane.b32.xlu0 %v785, 64
    %v789 = vpop.permute.xlu0 %788
    %v791 = vmul.f32 %v784, %v789
    %793 = vrot.lane.b32.xlu0 %v791, 32
    %v794 = vpop.permute.xlu0 %793
    %v796 = vadd.f32 %v786, %v794
    %v797 = vtanh.pop %v796
    %799 = vrot.lane.b32.xlu0 %v797, 64
    %v800 = vpop.permute.xlu0 %799
    %v802 = vmul.f32 %v784, %v800
    %804 = vrot.lane.b32.xlu0 %v802, 32
    %v805 = vpop.permute.xlu0 %804
    %807 = vst.msk [vmem:[#allocation3 + $0x18] sm:$0xff] %vm177, %v805
    %v808 = vld [vmem:[#allocation2 + $0x48] sm:$0xff]
    %v809 = vpack.c.bf16 %v708, %v708
    %v810 = vld [vmem:[%s4] sm:$0xf]
    %v811 = vld [vmem:[%s4 + $0x4] sm:$0xf]
    %v812 = vld [vmem:[%s4 + $0x8] sm:$0xf]
    %v813 = vld [vmem:[%s4 + $0xc] sm:$0xf]
    %815 = vrot.lane.b32.xlu0 %v809, 32
    %v816 = vpop.permute.xlu0 %815
    %v821 = vunpack.c.l.b16 %v810
    %v822 = vunpack.c.l.b16 %v811
    %v823 = vunpack.c.l.b16 %v812
    %v824 = vunpack.c.l.b16 %v813
    %v825 = vpack.c.b16 %v822, %v821
    %v826 = vpack.c.b16 %v824, %v823
    %v830 = vsel %vm177, %v816, 0
    %832 = vmatprep.subr.bf16.mxu0 0
    %833 = vmatpush1.bf16.msra.mxu0 0
    %834 = vmatprep.subr.bf16.mxu0 0
    %835 = vmatpush1.bf16.msra.mxu0 0
    %836 = vmatprep.subr.bf16.mxu0 0
    %837 = vmatpush1.bf16.msra.mxu0 0
    %838 = vmatprep.subr.bf16.mxu0 0
    %839 = vmatpush1.bf16.msra.mxu0 0
    %840 = vmatprep.subr.bf16.mxu0 0
    %841 = vmatpush1.bf16.msra.mxu0 0
    %842 = vmatprep.subr.bf16.mxu0 0
    %843 = vmatpush1.bf16.msra.mxu0 0
    %844 = vmatprep.subr.bf16.mxu0 0
    %845 = vmatpush1.bf16.msra.mxu0 %v826
    %846 = vmatprep.subr.bf16.mxu0 0
    %847 = vmatpush1.bf16.msra.mxu0 %v825
    %848 = vmatprep.subr.bf16.mxu0 0
    %849 = vmatpush2.bf16.msra.mxu0 0
    %850 = vmatprep.subr.bf16.mxu0 0
    %851 = vmatpush2.bf16.msra.mxu0 0
    %852 = vmatprep.subr.bf16.mxu0 0
    %853 = vmatpush2.bf16.msra.mxu0 0
    %854 = vmatprep.subr.bf16.mxu0 0
    %855 = vmatpush2.bf16.msra.mxu0 0
    %856 = vmatprep.subr.bf16.mxu0 0
    %857 = vmatpush2.bf16.msra.mxu0 0
    %858 = vmatprep.subr.bf16.mxu0 0
    %859 = vmatpush2.bf16.msra.mxu0 0
    %860 = vmatprep.subr.bf16.mxu0 0
    %861 = vmatpush2.bf16.msra.mxu0 0
    %862 = vmatprep.subr.bf16.mxu0 0
    %863 = vmatpush2.bf16.msra.mxu0 0
    %864 = vmatprep.mubr.bf16.mxu0 0
    %865 = vmatmul.mubr.bf16.gmra.mxu0 %v830
    %v866 = vpop.f32.mrf.mxu0
    %v867 = vadd.f32 0.0, %v866
    %v868 = vpop.f32.mrf.mxu0
    %v869 = vpop.f32.mrf.mxu0
    %v870 = vpop.f32.mrf.mxu0
    %871 = vdwg.mxu0
    %v872 = vadd.f32 %v808, %v867
    %v873 = vxor.u32 %v872, 2147483648
    %v874 = vmul.f32 %v873, 1.442695
    %v875 = vpow.pop %v874
    %v876 = vadd.f32 %v875, 1.0
    %v877 = vrcp.pop %v876
    %v878 = vmul.f32 1.0, %v877
    %v879 = vtanh.pop %v872
    %v880 = vmul.f32 %v878, %v702
    %882 = vrot.lane.b32.xlu0 %v879, 64
    %v883 = vpop.permute.xlu0 %882
    %v885 = vmul.f32 %v878, %v883
    %887 = vrot.lane.b32.xlu0 %v885, 32
    %v888 = vpop.permute.xlu0 %887
    %v890 = vadd.f32 %v880, %v888
    %v891 = vtanh.pop %v890
    %893 = vrot.lane.b32.xlu0 %v891, 64
    %v894 = vpop.permute.xlu0 %893
    %v896 = vmul.f32 %v878, %v894
    %898 = vrot.lane.b32.xlu0 %v896, 32
    %v899 = vpop.permute.xlu0 %898
    %901 = vst.msk [vmem:[#allocation4 + $0x20] sm:$0xff] %vm177, %v899
    %v902 = vld [vmem:[#allocation2 + $0x40] sm:$0xff]
    %v903 = vpack.c.bf16 %v802, %v802
    %v904 = vld [vmem:[%s3] sm:$0xf]
    %v905 = vld [vmem:[%s3 + $0x4] sm:$0xf]
    %v906 = vld [vmem:[%s3 + $0x8] sm:$0xf]
    %v907 = vld [vmem:[%s3 + $0xc] sm:$0xf]
    %909 = vrot.lane.b32.xlu0 %v903, 32
    %v910 = vpop.permute.xlu0 %909
    %v915 = vunpack.c.l.b16 %v904
    %v916 = vunpack.c.l.b16 %v905
    %v917 = vunpack.c.l.b16 %v906
    %v918 = vunpack.c.l.b16 %v907
    %v919 = vpack.c.b16 %v916, %v915
    %v920 = vpack.c.b16 %v918, %v917
    %v924 = vsel %vm177, %v910, 0
    %926 = vmatprep.subr.bf16.mxu0 0
    %927 = vmatpush1.bf16.msra.mxu0 0
    %928 = vmatprep.subr.bf16.mxu0 0
    %929 = vmatpush1.bf16.msra.mxu0 0
    %930 = vmatprep.subr.bf16.mxu0 0
    %931 = vmatpush1.bf16.msra.mxu0 0
    %932 = vmatprep.subr.bf16.mxu0 0
    %933 = vmatpush1.bf16.msra.mxu0 0
    %934 = vmatprep.subr.bf16.mxu0 0
    %935 = vmatpush1.bf16.msra.mxu0 0
    %936 = vmatprep.subr.bf16.mxu0 0
    %937 = vmatpush1.bf16.msra.mxu0 0
    %938 = vmatprep.subr.bf16.mxu0 0
    %939 = vmatpush1.bf16.msra.mxu0 %v920
    %940 = vmatprep.subr.bf16.mxu0 0
    %941 = vmatpush1.bf16.msra.mxu0 %v919
    %942 = vmatprep.subr.bf16.mxu0 0
    %943 = vmatpush2.bf16.msra.mxu0 0
    %944 = vmatprep.subr.bf16.mxu0 0
    %945 = vmatpush2.bf16.msra.mxu0 0
    %946 = vmatprep.subr.bf16.mxu0 0
    %947 = vmatpush2.bf16.msra.mxu0 0
    %948 = vmatprep.subr.bf16.mxu0 0
    %949 = vmatpush2.bf16.msra.mxu0 0
    %950 = vmatprep.subr.bf16.mxu0 0
    %951 = vmatpush2.bf16.msra.mxu0 0
    %952 = vmatprep.subr.bf16.mxu0 0
    %953 = vmatpush2.bf16.msra.mxu0 0
    %954 = vmatprep.subr.bf16.mxu0 0
    %955 = vmatpush2.bf16.msra.mxu0 0
    %956 = vmatprep.subr.bf16.mxu0 0
    %957 = vmatpush2.bf16.msra.mxu0 0
    %958 = vmatprep.mubr.bf16.mxu0 0
    %959 = vmatmul.mubr.bf16.gmra.mxu0 %v924
    %v960 = vpop.f32.mrf.mxu0
    %v961 = vadd.f32 0.0, %v960
    %v962 = vpop.f32.mrf.mxu0
    %v963 = vpop.f32.mrf.mxu0
    %v964 = vpop.f32.mrf.mxu0
    %965 = vdwg.mxu0
    %v966 = vadd.f32 %v902, %v961
    %v967 = vxor.u32 %v966, 2147483648
    %v968 = vmul.f32 %v967, 1.442695
    %v969 = vpow.pop %v968
    %v970 = vadd.f32 %v969, 1.0
    %v971 = vrcp.pop %v970
    %v972 = vmul.f32 1.0, %v971
    %v973 = vtanh.pop %v966
    %v974 = vmul.f32 %v972, %v796
    %976 = vrot.lane.b32.xlu0 %v973, 64
    %v977 = vpop.permute.xlu0 %976
    %v979 = vmul.f32 %v972, %v977
    %981 = vrot.lane.b32.xlu0 %v979, 32
    %v982 = vpop.permute.xlu0 %981
    %v984 = vadd.f32 %v974, %v982
    %v985 = vtanh.pop %v984
    %987 = vrot.lane.b32.xlu0 %v985, 64
    %v988 = vpop.permute.xlu0 %987
    %v990 = vmul.f32 %v972, %v988
    %992 = vrot.lane.b32.xlu0 %v990, 32
    %v993 = vpop.permute.xlu0 %992
    %995 = vst.msk [vmem:[#allocation3 + $0x20] sm:$0xff] %vm177, %v993
    %v996 = vld [vmem:[#allocation2 + $0x38] sm:$0xff]
    %v997 = vpack.c.bf16 %v896, %v896
    %v998 = vld [vmem:[%s4] sm:$0xf]
    %v999 = vld [vmem:[%s4 + $0x4] sm:$0xf]
    %v1000 = vld [vmem:[%s4 + $0x8] sm:$0xf]
    %v1001 = vld [vmem:[%s4 + $0xc] sm:$0xf]
    %1003 = vrot.lane.b32.xlu0 %v997, 32
    %v1004 = vpop.permute.xlu0 %1003
    %v1009 = vunpack.c.l.b16 %v998
    %v1010 = vunpack.c.l.b16 %v999
    %v1011 = vunpack.c.l.b16 %v1000
    %v1012 = vunpack.c.l.b16 %v1001
    %v1013 = vpack.c.b16 %v1010, %v1009
    %v1014 = vpack.c.b16 %v1012, %v1011
    %v1018 = vsel %vm177, %v1004, 0
    %1020 = vmatprep.subr.bf16.mxu0 0
    %1021 = vmatpush1.bf16.msra.mxu0 0
    %1022 = vmatprep.subr.bf16.mxu0 0
    %1023 = vmatpush1.bf16.msra.mxu0 0
    %1024 = vmatprep.subr.bf16.mxu0 0
    %1025 = vmatpush1.bf16.msra.mxu0 0
    %1026 = vmatprep.subr.bf16.mxu0 0
    %1027 = vmatpush1.bf16.msra.mxu0 0
    %1028 = vmatprep.subr.bf16.mxu0 0
    %1029 = vmatpush1.bf16.msra.mxu0 0
    %1030 = vmatprep.subr.bf16.mxu0 0
    %1031 = vmatpush1.bf16.msra.mxu0 0
    %1032 = vmatprep.subr.bf16.mxu0 0
    %1033 = vmatpush1.bf16.msra.mxu0 %v1014
    %1034 = vmatprep.subr.bf16.mxu0 0
    %1035 = vmatpush1.bf16.msra.mxu0 %v1013
    %1036 = vmatprep.subr.bf16.mxu0 0
    %1037 = vmatpush2.bf16.msra.mxu0 0
    %1038 = vmatprep.subr.bf16.mxu0 0
    %1039 = vmatpush2.bf16.msra.mxu0 0
    %1040 = vmatprep.subr.bf16.mxu0 0
    %1041 = vmatpush2.bf16.msra.mxu0 0
    %1042 = vmatprep.subr.bf16.mxu0 0
    %1043 = vmatpush2.bf16.msra.mxu0 0
    %1044 = vmatprep.subr.bf16.mxu0 0
    %1045 = vmatpush2.bf16.msra.mxu0 0
    %1046 = vmatprep.subr.bf16.mxu0 0
    %1047 = vmatpush2.bf16.msra.mxu0 0
    %1048 = vmatprep.subr.bf16.mxu0 0
    %1049 = vmatpush2.bf16.msra.mxu0 0
    %1050 = vmatprep.subr.bf16.mxu0 0
    %1051 = vmatpush2.bf16.msra.mxu0 0
    %1052 = vmatprep.mubr.bf16.mxu0 0
    %1053 = vmatmul.mubr.bf16.gmra.mxu0 %v1018
    %v1054 = vpop.f32.mrf.mxu0
    %v1055 = vadd.f32 0.0, %v1054
    %v1056 = vpop.f32.mrf.mxu0
    %v1057 = vpop.f32.mrf.mxu0
    %v1058 = vpop.f32.mrf.mxu0
    %1059 = vdwg.mxu0
    %v1060 = vadd.f32 %v996, %v1055
    %v1061 = vxor.u32 %v1060, 2147483648
    %v1062 = vmul.f32 %v1061, 1.442695
    %v1063 = vpow.pop %v1062
    %v1064 = vadd.f32 %v1063, 1.0
    %v1065 = vrcp.pop %v1064
    %v1066 = vmul.f32 1.0, %v1065
    %v1067 = vtanh.pop %v1060
    %v1068 = vmul.f32 %v1066, %v890
    %1070 = vrot.lane.b32.xlu0 %v1067, 64
    %v1071 = vpop.permute.xlu0 %1070
    %v1073 = vmul.f32 %v1066, %v1071
    %1075 = vrot.lane.b32.xlu0 %v1073, 32
    %v1076 = vpop.permute.xlu0 %1075
    %v1078 = vadd.f32 %v1068, %v1076
    %v1079 = vtanh.pop %v1078
    %1081 = vrot.lane.b32.xlu0 %v1079, 64
    %v1082 = vpop.permute.xlu0 %1081
    %v1084 = vmul.f32 %v1066, %v1082
    %1086 = vrot.lane.b32.xlu0 %v1084, 32
    %v1087 = vpop.permute.xlu0 %1086
    %1089 = vst.msk [vmem:[#allocation4 + $0x18] sm:$0xff] %vm177, %v1087
    %v1090 = vld [vmem:[#allocation2 + $0x50] sm:$0xff]
    %v1091 = vpack.c.bf16 %v990, %v990
    %v1092 = vld [vmem:[%s3] sm:$0xf]
    %v1093 = vld [vmem:[%s3 + $0x4] sm:$0xf]
    %v1094 = vld [vmem:[%s3 + $0x8] sm:$0xf]
    %v1095 = vld [vmem:[%s3 + $0xc] sm:$0xf]
    %1097 = vrot.lane.b32.xlu0 %v1091, 32
    %v1098 = vpop.permute.xlu0 %1097
    %v1103 = vunpack.c.l.b16 %v1092
    %v1104 = vunpack.c.l.b16 %v1093
    %v1105 = vunpack.c.l.b16 %v1094
    %v1106 = vunpack.c.l.b16 %v1095
    %v1107 = vpack.c.b16 %v1104, %v1103
    %v1108 = vpack.c.b16 %v1106, %v1105
    %v1112 = vsel %vm177, %v1098, 0
    %1114 = vmatprep.subr.bf16.mxu0 0
    %1115 = vmatpush1.bf16.msra.mxu0 0
    %1116 = vmatprep.subr.bf16.mxu0 0
    %1117 = vmatpush1.bf16.msra.mxu0 0
    %1118 = vmatprep.subr.bf16.mxu0 0
    %1119 = vmatpush1.bf16.msra.mxu0 0
    %1120 = vmatprep.subr.bf16.mxu0 0
    %1121 = vmatpush1.bf16.msra.mxu0 0
    %1122 = vmatprep.subr.bf16.mxu0 0
    %1123 = vmatpush1.bf16.msra.mxu0 0
    %1124 = vmatprep.subr.bf16.mxu0 0
    %1125 = vmatpush1.bf16.msra.mxu0 0
    %1126 = vmatprep.subr.bf16.mxu0 0
    %1127 = vmatpush1.bf16.msra.mxu0 %v1108
    %1128 = vmatprep.subr.bf16.mxu0 0
    %1129 = vmatpush1.bf16.msra.mxu0 %v1107
    %1130 = vmatprep.subr.bf16.mxu0 0
    %1131 = vmatpush2.bf16.msra.mxu0 0
    %1132 = vmatprep.subr.bf16.mxu0 0
    %1133 = vmatpush2.bf16.msra.mxu0 0
    %1134 = vmatprep.subr.bf16.mxu0 0
    %1135 = vmatpush2.bf16.msra.mxu0 0
    %1136 = vmatprep.subr.bf16.mxu0 0
    %1137 = vmatpush2.bf16.msra.mxu0 0
    %1138 = vmatprep.subr.bf16.mxu0 0
    %1139 = vmatpush2.bf16.msra.mxu0 0
    %1140 = vmatprep.subr.bf16.mxu0 0
    %1141 = vmatpush2.bf16.msra.mxu0 0
    %1142 = vmatprep.subr.bf16.mxu0 0
    %1143 = vmatpush2.bf16.msra.mxu0 0
    %1144 = vmatprep.subr.bf16.mxu0 0
    %1145 = vmatpush2.bf16.msra.mxu0 0
    %1146 = vmatprep.mubr.bf16.mxu0 0
    %1147 = vmatmul.mubr.bf16.gmra.mxu0 %v1112
    %v1148 = vpop.f32.mrf.mxu0
    %v1149 = vadd.f32 0.0, %v1148
    %v1150 = vpop.f32.mrf.mxu0
    %v1151 = vpop.f32.mrf.mxu0
    %v1152 = vpop.f32.mrf.mxu0
    %1153 = vdwg.mxu0
    %v1154 = vadd.f32 %v1090, %v1149
    %v1155 = vxor.u32 %v1154, 2147483648
    %v1156 = vmul.f32 %v1155, 1.442695
    %v1157 = vpow.pop %v1156
    %v1158 = vadd.f32 %v1157, 1.0
    %v1159 = vrcp.pop %v1158
    %v1160 = vmul.f32 1.0, %v1159
    %v1161 = vtanh.pop %v1154
    %v1162 = vmul.f32 %v1160, %v984
    %1164 = vrot.lane.b32.xlu0 %v1161, 64
    %v1165 = vpop.permute.xlu0 %1164
    %v1167 = vmul.f32 %v1160, %v1165
    %1169 = vrot.lane.b32.xlu0 %v1167, 32
    %v1170 = vpop.permute.xlu0 %1169
    %v1172 = vadd.f32 %v1162, %v1170
    %v1173 = vtanh.pop %v1172
    %1175 = vrot.lane.b32.xlu0 %v1173, 64
    %v1176 = vpop.permute.xlu0 %1175
    %v1178 = vmul.f32 %v1160, %v1176
    %1180 = vrot.lane.b32.xlu0 %v1178, 32
    %v1181 = vpop.permute.xlu0 %1180
    %1183 = vst.msk [vmem:[#allocation3 + $0x28] sm:$0xff] %vm177, %v1181
    %v1184 = vld [vmem:[#allocation2 + $0x28] sm:$0xff]
    %v1185 = vpack.c.bf16 %v1084, %v1084
    %v1186 = vld [vmem:[%s4] sm:$0xf]
    %v1187 = vld [vmem:[%s4 + $0x4] sm:$0xf]
    %v1188 = vld [vmem:[%s4 + $0x8] sm:$0xf]
    %v1189 = vld [vmem:[%s4 + $0xc] sm:$0xf]
    %1191 = vrot.lane.b32.xlu0 %v1185, 32
    %v1192 = vpop.permute.xlu0 %1191
    %v1197 = vunpack.c.l.b16 %v1186
    %v1198 = vunpack.c.l.b16 %v1187
    %v1199 = vunpack.c.l.b16 %v1188
    %v1200 = vunpack.c.l.b16 %v1189
    %v1201 = vpack.c.b16 %v1198, %v1197
    %v1202 = vpack.c.b16 %v1200, %v1199
    %v1206 = vsel %vm177, %v1192, 0
    %1208 = vmatprep.subr.bf16.mxu0 0
    %1209 = vmatpush1.bf16.msra.mxu0 0
    %1210 = vmatprep.subr.bf16.mxu0 0
    %1211 = vmatpush1.bf16.msra.mxu0 0
    %1212 = vmatprep.subr.bf16.mxu0 0
    %1213 = vmatpush1.bf16.msra.mxu0 0
    %1214 = vmatprep.subr.bf16.mxu0 0
    %1215 = vmatpush1.bf16.msra.mxu0 0
    %1216 = vmatprep.subr.bf16.mxu0 0
    %1217 = vmatpush1.bf16.msra.mxu0 0
    %1218 = vmatprep.subr.bf16.mxu0 0
    %1219 = vmatpush1.bf16.msra.mxu0 0
    %1220 = vmatprep.subr.bf16.mxu0 0
    %1221 = vmatpush1.bf16.msra.mxu0 %v1202
    %1222 = vmatprep.subr.bf16.mxu0 0
    %1223 = vmatpush1.bf16.msra.mxu0 %v1201
    %1224 = vmatprep.subr.bf16.mxu0 0
    %1225 = vmatpush2.bf16.msra.mxu0 0
    %1226 = vmatprep.subr.bf16.mxu0 0
    %1227 = vmatpush2.bf16.msra.mxu0 0
    %1228 = vmatprep.subr.bf16.mxu0 0
    %1229 = vmatpush2.bf16.msra.mxu0 0
    %1230 = vmatprep.subr.bf16.mxu0 0
    %1231 = vmatpush2.bf16.msra.mxu0 0
    %1232 = vmatprep.subr.bf16.mxu0 0
    %1233 = vmatpush2.bf16.msra.mxu0 0
    %1234 = vmatprep.subr.bf16.mxu0 0
    %1235 = vmatpush2.bf16.msra.mxu0 0
    %1236 = vmatprep.subr.bf16.mxu0 0
    %1237 = vmatpush2.bf16.msra.mxu0 0
    %1238 = vmatprep.subr.bf16.mxu0 0
    %1239 = vmatpush2.bf16.msra.mxu0 0
    %1240 = vmatprep.mubr.bf16.mxu0 0
    %1241 = vmatmul.mubr.bf16.gmra.mxu0 %v1206
    %v1242 = vpop.f32.mrf.mxu0
    %v1243 = vadd.f32 0.0, %v1242
    %v1244 = vpop.f32.mrf.mxu0
    %v1245 = vpop.f32.mrf.mxu0
    %v1246 = vpop.f32.mrf.mxu0
    %1247 = vdwg.mxu0
    %v1248 = vadd.f32 %v1184, %v1243
    %v1249 = vxor.u32 %v1248, 2147483648
    %v1250 = vmul.f32 %v1249, 1.442695
    %v1251 = vpow.pop %v1250
    %v1252 = vadd.f32 %v1251, 1.0
    %v1253 = vrcp.pop %v1252
    %v1254 = vmul.f32 1.0, %v1253
    %v1255 = vtanh.pop %v1248
    %v1256 = vmul.f32 %v1254, %v1078
    %1258 = vrot.lane.b32.xlu0 %v1255, 64
    %v1259 = vpop.permute.xlu0 %1258
    %v1261 = vmul.f32 %v1254, %v1259
    %1263 = vrot.lane.b32.xlu0 %v1261, 32
    %v1264 = vpop.permute.xlu0 %1263
    %v1266 = vadd.f32 %v1256, %v1264
    %v1267 = vtanh.pop %v1266
    %1269 = vrot.lane.b32.xlu0 %v1267, 64
    %v1270 = vpop.permute.xlu0 %1269
    %v1272 = vmul.f32 %v1254, %v1270
    %1274 = vrot.lane.b32.xlu0 %v1272, 32
    %v1275 = vpop.permute.xlu0 %1274
    %1277 = vst.msk [vmem:[#allocation4 + $0x10] sm:$0xff] %vm177, %v1275
    %v1278 = vld [vmem:[#allocation2 + $0x60] sm:$0xff]
    %v1279 = vpack.c.bf16 %v1178, %v1178
    %v1280 = vld [vmem:[%s3] sm:$0xf]
    %v1281 = vld [vmem:[%s3 + $0x4] sm:$0xf]
    %v1282 = vld [vmem:[%s3 + $0x8] sm:$0xf]
    %v1283 = vld [vmem:[%s3 + $0xc] sm:$0xf]
    %1285 = vrot.lane.b32.xlu0 %v1279, 32
    %v1286 = vpop.permute.xlu0 %1285
    %v1291 = vunpack.c.l.b16 %v1280
    %v1292 = vunpack.c.l.b16 %v1281
    %v1293 = vunpack.c.l.b16 %v1282
    %v1294 = vunpack.c.l.b16 %v1283
    %v1295 = vpack.c.b16 %v1292, %v1291
    %v1296 = vpack.c.b16 %v1294, %v1293
    %v1300 = vsel %vm177, %v1286, 0
    %1302 = vmatprep.subr.bf16.mxu0 0
    %1303 = vmatpush1.bf16.msra.mxu0 0
    %1304 = vmatprep.subr.bf16.mxu0 0
    %1305 = vmatpush1.bf16.msra.mxu0 0
    %1306 = vmatprep.subr.bf16.mxu0 0
    %1307 = vmatpush1.bf16.msra.mxu0 0
    %1308 = vmatprep.subr.bf16.mxu0 0
    %1309 = vmatpush1.bf16.msra.mxu0 0
    %1310 = vmatprep.subr.bf16.mxu0 0
    %1311 = vmatpush1.bf16.msra.mxu0 0
    %1312 = vmatprep.subr.bf16.mxu0 0
    %1313 = vmatpush1.bf16.msra.mxu0 0
    %1314 = vmatprep.subr.bf16.mxu0 0
    %1315 = vmatpush1.bf16.msra.mxu0 %v1296
    %1316 = vmatprep.subr.bf16.mxu0 0
    %1317 = vmatpush1.bf16.msra.mxu0 %v1295
    %1318 = vmatprep.subr.bf16.mxu0 0
    %1319 = vmatpush2.bf16.msra.mxu0 0
    %1320 = vmatprep.subr.bf16.mxu0 0
    %1321 = vmatpush2.bf16.msra.mxu0 0
    %1322 = vmatprep.subr.bf16.mxu0 0
    %1323 = vmatpush2.bf16.msra.mxu0 0
    %1324 = vmatprep.subr.bf16.mxu0 0
    %1325 = vmatpush2.bf16.msra.mxu0 0
    %1326 = vmatprep.subr.bf16.mxu0 0
    %1327 = vmatpush2.bf16.msra.mxu0 0
    %1328 = vmatprep.subr.bf16.mxu0 0
    %1329 = vmatpush2.bf16.msra.mxu0 0
    %1330 = vmatprep.subr.bf16.mxu0 0
    %1331 = vmatpush2.bf16.msra.mxu0 0
    %1332 = vmatprep.subr.bf16.mxu0 0
    %1333 = vmatpush2.bf16.msra.mxu0 0
    %1334 = vmatprep.mubr.bf16.mxu0 0
    %1335 = vmatmul.mubr.bf16.gmra.mxu0 %v1300
    %v1336 = vpop.f32.mrf.mxu0
    %v1337 = vadd.f32 0.0, %v1336
    %v1338 = vpop.f32.mrf.mxu0
    %v1339 = vpop.f32.mrf.mxu0
    %v1340 = vpop.f32.mrf.mxu0
    %1341 = vdwg.mxu0
    %v1342 = vadd.f32 %v1278, %v1337
    %v1343 = vxor.u32 %v1342, 2147483648
    %v1344 = vmul.f32 %v1343, 1.442695
    %v1345 = vpow.pop %v1344
    %v1346 = vadd.f32 %v1345, 1.0
    %v1347 = vrcp.pop %v1346
    %v1348 = vmul.f32 1.0, %v1347
    %v1349 = vtanh.pop %v1342
    %v1350 = vmul.f32 %v1348, %v1172
    %1352 = vrot.lane.b32.xlu0 %v1349, 64
    %v1353 = vpop.permute.xlu0 %1352
    %v1355 = vmul.f32 %v1348, %v1353
    %1357 = vrot.lane.b32.xlu0 %v1355, 32
    %v1358 = vpop.permute.xlu0 %1357
    %v1360 = vadd.f32 %v1350, %v1358
    %v1361 = vtanh.pop %v1360
    %1363 = vrot.lane.b32.xlu0 %v1361, 64
    %v1364 = vpop.permute.xlu0 %1363
    %v1366 = vmul.f32 %v1348, %v1364
    %1368 = vrot.lane.b32.xlu0 %v1366, 32
    %v1369 = vpop.permute.xlu0 %1368
    %1371 = vst.msk [vmem:[#allocation3 + $0x30] sm:$0xff] %vm177, %v1369
    %v1372 = vld [vmem:[#allocation2 + $0x18] sm:$0xff]
    %v1373 = vpack.c.bf16 %v1272, %v1272
    %v1374 = vld [vmem:[%s4] sm:$0xf]
    %v1375 = vld [vmem:[%s4 + $0x4] sm:$0xf]
    %v1376 = vld [vmem:[%s4 + $0x8] sm:$0xf]
    %v1377 = vld [vmem:[%s4 + $0xc] sm:$0xf]
    %1379 = vrot.lane.b32.xlu0 %v1373, 32
    %v1380 = vpop.permute.xlu0 %1379
    %v1385 = vunpack.c.l.b16 %v1374
    %v1386 = vunpack.c.l.b16 %v1375
    %v1387 = vunpack.c.l.b16 %v1376
    %v1388 = vunpack.c.l.b16 %v1377
    %v1389 = vpack.c.b16 %v1386, %v1385
    %v1390 = vpack.c.b16 %v1388, %v1387
    %v1394 = vsel %vm177, %v1380, 0
    %1396 = vmatprep.subr.bf16.mxu0 0
    %1397 = vmatpush1.bf16.msra.mxu0 0
    %1398 = vmatprep.subr.bf16.mxu0 0
    %1399 = vmatpush1.bf16.msra.mxu0 0
    %1400 = vmatprep.subr.bf16.mxu0 0
    %1401 = vmatpush1.bf16.msra.mxu0 0
    %1402 = vmatprep.subr.bf16.mxu0 0
    %1403 = vmatpush1.bf16.msra.mxu0 0
    %1404 = vmatprep.subr.bf16.mxu0 0
    %1405 = vmatpush1.bf16.msra.mxu0 0
    %1406 = vmatprep.subr.bf16.mxu0 0
    %1407 = vmatpush1.bf16.msra.mxu0 0
    %1408 = vmatprep.subr.bf16.mxu0 0
    %1409 = vmatpush1.bf16.msra.mxu0 %v1390
    %1410 = vmatprep.subr.bf16.mxu0 0
    %1411 = vmatpush1.bf16.msra.mxu0 %v1389
    %1412 = vmatprep.subr.bf16.mxu0 0
    %1413 = vmatpush2.bf16.msra.mxu0 0
    %1414 = vmatprep.subr.bf16.mxu0 0
    %1415 = vmatpush2.bf16.msra.mxu0 0
    %1416 = vmatprep.subr.bf16.mxu0 0
    %1417 = vmatpush2.bf16.msra.mxu0 0
    %1418 = vmatprep.subr.bf16.mxu0 0
    %1419 = vmatpush2.bf16.msra.mxu0 0
    %1420 = vmatprep.subr.bf16.mxu0 0
    %1421 = vmatpush2.bf16.msra.mxu0 0
    %1422 = vmatprep.subr.bf16.mxu0 0
    %1423 = vmatpush2.bf16.msra.mxu0 0
    %1424 = vmatprep.subr.bf16.mxu0 0
    %1425 = vmatpush2.bf16.msra.mxu0 0
    %1426 = vmatprep.subr.bf16.mxu0 0
    %1427 = vmatpush2.bf16.msra.mxu0 0
    %1428 = vmatprep.mubr.bf16.mxu0 0
    %1429 = vmatmul.mubr.bf16.gmra.mxu0 %v1394
    %v1430 = vpop.f32.mrf.mxu0
    %v1431 = vadd.f32 0.0, %v1430
    %v1432 = vpop.f32.mrf.mxu0
    %v1433 = vpop.f32.mrf.mxu0
    %v1434 = vpop.f32.mrf.mxu0
    %1435 = vdwg.mxu0
    %v1436 = vadd.f32 %v1372, %v1431
    %v1437 = vxor.u32 %v1436, 2147483648
    %v1438 = vmul.f32 %v1437, 1.442695
    %v1439 = vpow.pop %v1438
    %v1440 = vadd.f32 %v1439, 1.0
    %v1441 = vrcp.pop %v1440
    %v1442 = vmul.f32 1.0, %v1441
    %v1443 = vtanh.pop %v1436
    %v1444 = vmul.f32 %v1442, %v1266
    %1446 = vrot.lane.b32.xlu0 %v1443, 64
    %v1447 = vpop.permute.xlu0 %1446
    %v1449 = vmul.f32 %v1442, %v1447
    %1451 = vrot.lane.b32.xlu0 %v1449, 32
    %v1452 = vpop.permute.xlu0 %1451
    %v1454 = vadd.f32 %v1444, %v1452
    %v1455 = vtanh.pop %v1454
    %1457 = vrot.lane.b32.xlu0 %v1455, 64
    %v1458 = vpop.permute.xlu0 %1457
    %v1460 = vmul.f32 %v1442, %v1458
    %1462 = vrot.lane.b32.xlu0 %v1460, 32
    %v1463 = vpop.permute.xlu0 %1462
    %1465 = vst.msk [vmem:[#allocation4 + $0x8] sm:$0xff] %vm177, %v1463
    %v1466 = vld [vmem:[#allocation2 + $0x70] sm:$0xff]
    %v1467 = vpack.c.bf16 %v1366, %v1366
    %v1468 = vld [vmem:[%s3] sm:$0xf]
    %v1469 = vld [vmem:[%s3 + $0x4] sm:$0xf]
    %v1470 = vld [vmem:[%s3 + $0x8] sm:$0xf]
    %v1471 = vld [vmem:[%s3 + $0xc] sm:$0xf]
    %1473 = vrot.lane.b32.xlu0 %v1467, 32
    %v1474 = vpop.permute.xlu0 %1473
    %v1479 = vunpack.c.l.b16 %v1468
    %v1480 = vunpack.c.l.b16 %v1469
    %v1481 = vunpack.c.l.b16 %v1470
    %v1482 = vunpack.c.l.b16 %v1471
    %v1483 = vpack.c.b16 %v1480, %v1479
    %v1484 = vpack.c.b16 %v1482, %v1481
    %v1488 = vsel %vm177, %v1474, 0
    %1490 = vmatprep.subr.bf16.mxu0 0
    %1491 = vmatpush1.bf16.msra.mxu0 0
    %1492 = vmatprep.subr.bf16.mxu0 0
    %1493 = vmatpush1.bf16.msra.mxu0 0
    %1494 = vmatprep.subr.bf16.mxu0 0
    %1495 = vmatpush1.bf16.msra.mxu0 0
    %1496 = vmatprep.subr.bf16.mxu0 0
    %1497 = vmatpush1.bf16.msra.mxu0 0
    %1498 = vmatprep.subr.bf16.mxu0 0
    %1499 = vmatpush1.bf16.msra.mxu0 0
    %1500 = vmatprep.subr.bf16.mxu0 0
    %1501 = vmatpush1.bf16.msra.mxu0 0
    %1502 = vmatprep.subr.bf16.mxu0 0
    %1503 = vmatpush1.bf16.msra.mxu0 %v1484
    %1504 = vmatprep.subr.bf16.mxu0 0
    %1505 = vmatpush1.bf16.msra.mxu0 %v1483
    %1506 = vmatprep.subr.bf16.mxu0 0
    %1507 = vmatpush2.bf16.msra.mxu0 0
    %1508 = vmatprep.subr.bf16.mxu0 0
    %1509 = vmatpush2.bf16.msra.mxu0 0
    %1510 = vmatprep.subr.bf16.mxu0 0
    %1511 = vmatpush2.bf16.msra.mxu0 0
    %1512 = vmatprep.subr.bf16.mxu0 0
    %1513 = vmatpush2.bf16.msra.mxu0 0
    %1514 = vmatprep.subr.bf16.mxu0 0
    %1515 = vmatpush2.bf16.msra.mxu0 0
    %1516 = vmatprep.subr.bf16.mxu0 0
    %1517 = vmatpush2.bf16.msra.mxu0 0
    %1518 = vmatprep.subr.bf16.mxu0 0
    %1519 = vmatpush2.bf16.msra.mxu0 0
    %1520 = vmatprep.subr.bf16.mxu0 0
    %1521 = vmatpush2.bf16.msra.mxu0 0
    %1522 = vmatprep.mubr.bf16.mxu0 0
    %1523 = vmatmul.mubr.bf16.gmra.mxu0 %v1488
    %v1524 = vpop.f32.mrf.mxu0
    %v1525 = vadd.f32 0.0, %v1524
    %v1526 = vpop.f32.mrf.mxu0
    %v1527 = vpop.f32.mrf.mxu0
    %v1528 = vpop.f32.mrf.mxu0
    %1529 = vdwg.mxu0
    %v1530 = vadd.f32 %v1466, %v1525
    %v1531 = vxor.u32 %v1530, 2147483648
    %v1532 = vmul.f32 %v1531, 1.442695
    %v1533 = vpow.pop %v1532
    %v1534 = vadd.f32 %v1533, 1.0
    %v1535 = vrcp.pop %v1534
    %v1536 = vmul.f32 1.0, %v1535
    %v1537 = vtanh.pop %v1530
    %v1538 = vmul.f32 %v1536, %v1360
    %1540 = vrot.lane.b32.xlu0 %v1537, 64
    %v1541 = vpop.permute.xlu0 %1540
    %v1543 = vmul.f32 %v1536, %v1541
    %1545 = vrot.lane.b32.xlu0 %v1543, 32
    %v1546 = vpop.permute.xlu0 %1545
    %v1548 = vadd.f32 %v1538, %v1546
    %v1549 = vtanh.pop %v1548
    %1551 = vrot.lane.b32.xlu0 %v1549, 64
    %v1552 = vpop.permute.xlu0 %1551
    %v1554 = vmul.f32 %v1536, %v1552
    %1556 = vrot.lane.b32.xlu0 %v1554, 32
    %v1557 = vpop.permute.xlu0 %1556
    %1559 = vst.msk [vmem:[#allocation3 + $0x38] sm:$0xff] %vm177, %v1557
    %v1560 = vld [vmem:[#allocation2 + $0x8] sm:$0xff]
    %v1561 = vpack.c.bf16 %v1460, %v1460
    %v1562 = vld [vmem:[%s4] sm:$0xf]
    %v1563 = vld [vmem:[%s4 + $0x4] sm:$0xf]
    %v1564 = vld [vmem:[%s4 + $0x8] sm:$0xf]
    %v1565 = vld [vmem:[%s4 + $0xc] sm:$0xf]
    %1567 = vrot.lane.b32.xlu0 %v1561, 32
    %v1568 = vpop.permute.xlu0 %1567
    %v1573 = vunpack.c.l.b16 %v1562
    %v1574 = vunpack.c.l.b16 %v1563
    %v1575 = vunpack.c.l.b16 %v1564
    %v1576 = vunpack.c.l.b16 %v1565
    %v1577 = vpack.c.b16 %v1574, %v1573
    %v1578 = vpack.c.b16 %v1576, %v1575
    %v1582 = vsel %vm177, %v1568, 0
    %1584 = vmatprep.subr.bf16.mxu0 0
    %1585 = vmatpush1.bf16.msra.mxu0 0
    %1586 = vmatprep.subr.bf16.mxu0 0
    %1587 = vmatpush1.bf16.msra.mxu0 0
    %1588 = vmatprep.subr.bf16.mxu0 0
    %1589 = vmatpush1.bf16.msra.mxu0 0
    %1590 = vmatprep.subr.bf16.mxu0 0
    %1591 = vmatpush1.bf16.msra.mxu0 0
    %1592 = vmatprep.subr.bf16.mxu0 0
    %1593 = vmatpush1.bf16.msra.mxu0 0
    %1594 = vmatprep.subr.bf16.mxu0 0
    %1595 = vmatpush1.bf16.msra.mxu0 0
    %1596 = vmatprep.subr.bf16.mxu0 0
    %1597 = vmatpush1.bf16.msra.mxu0 %v1578
    %1598 = vmatprep.subr.bf16.mxu0 0
    %1599 = vmatpush1.bf16.msra.mxu0 %v1577
    %1600 = vmatprep.subr.bf16.mxu0 0
    %1601 = vmatpush2.bf16.msra.mxu0 0
    %1602 = vmatprep.subr.bf16.mxu0 0
    %1603 = vmatpush2.bf16.msra.mxu0 0
    %1604 = vmatprep.subr.bf16.mxu0 0
    %1605 = vmatpush2.bf16.msra.mxu0 0
    %1606 = vmatprep.subr.bf16.mxu0 0
    %1607 = vmatpush2.bf16.msra.mxu0 0
    %1608 = vmatprep.subr.bf16.mxu0 0
    %1609 = vmatpush2.bf16.msra.mxu0 0
    %1610 = vmatprep.subr.bf16.mxu0 0
    %1611 = vmatpush2.bf16.msra.mxu0 0
    %1612 = vmatprep.subr.bf16.mxu0 0
    %1613 = vmatpush2.bf16.msra.mxu0 0
    %1614 = vmatprep.subr.bf16.mxu0 0
    %1615 = vmatpush2.bf16.msra.mxu0 0
    %1616 = vmatprep.mubr.bf16.mxu0 0
    %1617 = vmatmul.mubr.bf16.gmra.mxu0 %v1582
    %v1618 = vpop.f32.mrf.mxu0
    %v1619 = vadd.f32 0.0, %v1618
    %v1620 = vpop.f32.mrf.mxu0
    %v1621 = vpop.f32.mrf.mxu0
    %v1622 = vpop.f32.mrf.mxu0
    %1623 = vdwg.mxu0
    %v1624 = vadd.f32 %v1560, %v1619
    %v1625 = vxor.u32 %v1624, 2147483648
    %v1626 = vmul.f32 %v1625, 1.442695
    %v1627 = vpow.pop %v1626
    %v1628 = vadd.f32 %v1627, 1.0
    %v1629 = vrcp.pop %v1628
    %v1630 = vmul.f32 1.0, %v1629
    %v1631 = vtanh.pop %v1624
    %v1632 = vmul.f32 %v1630, %v1454
    %1634 = vrot.lane.b32.xlu0 %v1631, 64
    %v1635 = vpop.permute.xlu0 %1634
    %v1637 = vmul.f32 %v1630, %v1635
    %1639 = vrot.lane.b32.xlu0 %v1637, 32
    %v1640 = vpop.permute.xlu0 %1639
    %v1642 = vadd.f32 %v1632, %v1640
    %v1643 = vtanh.pop %v1642
    %1645 = vrot.lane.b32.xlu0 %v1643, 64
    %v1646 = vpop.permute.xlu0 %1645
    %v1648 = vmul.f32 %v1630, %v1646
    %1650 = vrot.lane.b32.xlu0 %v1648, 32
    %v1651 = vpop.permute.xlu0 %1650
    %1653 = vst.msk [vmem:[#allocation4] sm:$0xff] %vm177, %v1651
    %v1654 = vld [vmem:[#allocation3] sm:$0xff]
    %v1655 = vld [vmem:[#allocation3 + $0x8] sm:$0xff]
    %v1656 = vld [vmem:[#allocation3 + $0x10] sm:$0xff]
    %v1657 = vld [vmem:[#allocation3 + $0x18] sm:$0xff]
    %v1658 = vld [vmem:[#allocation3 + $0x20] sm:$0xff]
    %v1659 = vld [vmem:[#allocation3 + $0x28] sm:$0xff]
    %v1660 = vld [vmem:[#allocation3 + $0x30] sm:$0xff]
    %v1661 = vld [vmem:[#allocation3 + $0x38] sm:$0xff]
    %1662 = vst.msk [vmem:[#allocation5] sm:$0xff] %vm177, %v1654
    %1663 = vst.msk [vmem:[#allocation5 + $0x8] sm:$0xff] %vm177, %v1655
    %1664 = vst.msk [vmem:[#allocation5 + $0x10] sm:$0xff] %vm177, %v1656
    %1665 = vst.msk [vmem:[#allocation5 + $0x18] sm:$0xff] %vm177, %v1657
    %1666 = vst.msk [vmem:[#allocation5 + $0x20] sm:$0xff] %vm177, %v1658
    %1667 = vst.msk [vmem:[#allocation5 + $0x28] sm:$0xff] %vm177, %v1659
    %1668 = vst.msk [vmem:[#allocation5 + $0x30] sm:$0xff] %vm177, %v1660
    %1669 = vst.msk [vmem:[#allocation5 + $0x38] sm:$0xff] %vm177, %v1661
    %v1670 = vld [vmem:[#allocation4] sm:$0xff]
    %v1671 = vld [vmem:[#allocation4 + $0x8] sm:$0xff]
    %v1672 = vld [vmem:[#allocation4 + $0x10] sm:$0xff]
    %v1673 = vld [vmem:[#allocation4 + $0x18] sm:$0xff]
    %v1674 = vld [vmem:[#allocation4 + $0x20] sm:$0xff]
    %v1675 = vld [vmem:[#allocation4 + $0x28] sm:$0xff]
    %v1676 = vld [vmem:[#allocation4 + $0x30] sm:$0xff]
    %v1677 = vld [vmem:[#allocation4 + $0x38] sm:$0xff]
    %1686 = vrot.lane.b32.xlu0 %v1670, 32
    %v1687 = vpop.permute.xlu0 %1686
    %1688 = vrot.lane.b32.xlu0 %v1671, 32
    %v1689 = vpop.permute.xlu0 %1688
    %1690 = vrot.lane.b32.xlu0 %v1672, 32
    %v1691 = vpop.permute.xlu0 %1690
    %1692 = vrot.lane.b32.xlu0 %v1673, 32
    %v1693 = vpop.permute.xlu0 %1692
    %1694 = vrot.lane.b32.xlu0 %v1674, 32
    %v1695 = vpop.permute.xlu0 %1694
    %1696 = vrot.lane.b32.xlu0 %v1675, 32
    %v1697 = vpop.permute.xlu0 %1696
    %1698 = vrot.lane.b32.xlu0 %v1676, 32
    %v1699 = vpop.permute.xlu0 %1698
    %1700 = vrot.lane.b32.xlu0 %v1677, 32
    %v1701 = vpop.permute.xlu0 %1700
    %vm1710 = vcmask 523520
    %1711 = vst.msk [vmem:[#allocation5] sm:$0xff] %vm1710, %v1687
    %1712 = vst.msk [vmem:[#allocation5 + $0x8] sm:$0xff] %vm1710, %v1689
    %1713 = vst.msk [vmem:[#allocation5 + $0x10] sm:$0xff] %vm1710, %v1691
    %1714 = vst.msk [vmem:[#allocation5 + $0x18] sm:$0xff] %vm1710, %v1693
    %1715 = vst.msk [vmem:[#allocation5 + $0x20] sm:$0xff] %vm1710, %v1695
    %1716 = vst.msk [vmem:[#allocation5 + $0x28] sm:$0xff] %vm1710, %v1697
    %1717 = vst.msk [vmem:[#allocation5 + $0x30] sm:$0xff] %vm1710, %v1699
    %1718 = vst.msk [vmem:[#allocation5 + $0x38] sm:$0xff] %vm1710, %v1701
    // Predicated region
    $region22: #{tpu_custom_call.1} parent=1 // pred_check
      _
    $region23: #{tpu_custom_call.1} parent=1 // pred_check_branch
      %1720 = sbr.rel (0) target = $region25
    $region24: #{tpu_custom_call.1} parent=1 // pred_region
      %s1722 = ssub.s32 1024, 1024
      %1723 = vsyncadd [#allocation6], %s1722
      %s1724 = sshll.u32 [#allocation5], 4
      %s1725 = int_to_ptr.vmem [resolvable:$true] %s1724
      %1730 = dma.vmem_to_hbm [thread:$0]  %s1725, 1024, %s5, [#allocation6], 128, 128, 8
    $region25: #{tpu_custom_call.1} parent=1 // pred_fallthru
      _
    // Predicated region
    $region26: #{tpu_custom_call.1} parent=1 // pred_check
      _
    $region27: #{tpu_custom_call.1} parent=1 // pred_check_branch
      %1732 = sbr.rel (0) target = $region29
    $region28: #{tpu_custom_call.1} parent=1 // pred_region
      %1733 = dma.done [#allocation6], 1024
    $region29: #{tpu_custom_call.1} parent=1 // pred_fallthru
      _
    %1734 = vsyncpa [#allocation6], 1

</llo_original>
